<compile_context>
chip_gen: v7x
topology: tpu7x:2x2x1
jax: 0.10.0
libtpu: 0.0.40
codegen_flags: <defaults>
</compile_context>

<pallas_src>
import jax
import jax.numpy as jnp
from jax import lax
from jax.experimental import pallas as pl
from jax.experimental.pallas import tpu as pltpu


def _round_up(v, m):
    return (v + m - 1) // m * m


def gcn_kernel(at_ref, xs_ref, w_ref, normd_ref, o_ref, acc_ref):
    k = pl.program_id(1)

    @pl.when(k == 0)
    def _():
        acc_ref[...] = jnp.zeros_like(acc_ref)

    # Aggregation over this src tile: (T_DST, T_SRC) @ (T_SRC, C_in), f32 acc.
    # AT is bf16 (exact for small integer edge counts); upcast keeps full f32
    # accuracy while the HBM stream stays half-width.
    acc_ref[...] += jnp.dot(
        at_ref[...].astype(jnp.float32),
        xs_ref[...],
        preferred_element_type=jnp.float32,
    )

    @pl.when(k == pl.num_programs(1) - 1)
    def _():
        # destination norm (f32), then project to C_out once per dst tile
        agg = acc_ref[...] * normd_ref[...]
        h = jnp.dot(agg, w_ref[...], preferred_element_type=jnp.float32)
        # L2-normalize (p=2, dim=1, eps=1e-12) via rsqrt (EUP slot), then tanh
        ss = jnp.sum(h * h, axis=1, keepdims=True)
        inv = lax.rsqrt(jnp.maximum(ss, 1e-24))
        o_ref[...] = jnp.tanh(h * inv).astype(o_ref.dtype)


def gcn_conv(x, edge_index, weight, *, t_dst=256, t_src=512):
    """GCNConv forward.  x: (N, C_in) f32, edge_index: (2, E) i32,
    weight: (C_in, C_out) f32  ->  (N, C_out) f32."""
    n, c_in = x.shape
    c_out = weight.shape[1]
    assert max(t_dst, t_src) % min(t_dst, t_src) == 0

    n_pad = _round_up(n, max(t_dst, t_src))
    c_out_pad = _round_up(c_out, 128)          # lane-dense output stores

    # ---- graph preprocessing (glue, plain JAX) ----
    src, dst = edge_index[0], edge_index[1]
    ids = jnp.arange(n)
    # Build the TRANSPOSED adjacency directly: AT[dst, src] (no adj.T copy).
    adj_t = jnp.zeros((n_pad, n_pad), dtype=jnp.float32)
    adj_t = adj_t.at[dst, src].add(1.0)        # multigraph: duplicates count
    adj_t = adj_t.at[ids, ids].add(1.0)        # g.add_self_loop()
    deg = jnp.sum(adj_t, axis=0)               # out-degrees = col-sum of AT
    norm = jnp.power(deg, -0.5)
    norm = jnp.where(jnp.isinf(norm), 0.0, norm).reshape(n_pad, 1)

    at_bf16 = adj_t.astype(jnp.bfloat16)       # exact for counts <= 256

    x_pad = jnp.zeros((n_pad, c_in), jnp.float32).at[:n, :].set(x)
    xs = x_pad * norm                          # fold src norm in, f32

    w_pad = jnp.zeros((c_in, c_out_pad), jnp.float32).at[:, :c_out].set(weight)

    grid = (n_pad // t_dst, n_pad // t_src)    # (dst tiles, src tiles=reduction)

    out = pl.pallas_call(
        gcn_kernel,
        out_shape=jax.ShapeDtypeStruct((n_pad, c_out_pad), jnp.float32),
        grid_spec=pltpu.PrefetchScalarGridSpec(
            num_scalar_prefetch=0,
            grid=grid,
            in_specs=[
                pl.BlockSpec((t_dst, t_src), lambda i, k: (i, k)),      # AT
                pl.BlockSpec((t_src, c_in), lambda i, k: (k, 0)),       # x*norm
                pl.BlockSpec((c_in, c_out_pad), lambda i, k: (0, 0)),   # W
                pl.BlockSpec((t_dst, 1), lambda i, k: (i, 0)),          # norm dst
            ],
            out_specs=pl.BlockSpec((t_dst, c_out_pad), lambda i, k: (i, 0)),
            scratch_shapes=[pltpu.VMEM((t_dst, c_in), jnp.float32)],
        ),
        compiler_params=pltpu.CompilerParams(
            dimension_semantics=("parallel", "arbitrary"),
            vmem_limit_bytes=32 * 1024 * 1024,
        ),
    )(at_bf16, xs, w_pad, norm)

    return out[:n, :c_out]


def gcn_conv_ref(x, edge_index, weight):
    """Pure-JAX reference (original h-first formulation) for correctness."""
    n = x.shape[0]
    src, dst = edge_index[0], edge_index[1]
    adj = jnp.zeros((n, n), dtype=jnp.float32)
    adj = adj.at[src, dst].add(1.0)
    adj = adj + jnp.eye(n, dtype=jnp.float32)
    deg = jnp.sum(adj, axis=1)
    norm = jnp.power(deg, -0.5)
    norm = jnp.where(jnp.isinf(norm), 0.0, norm).reshape(n, 1)
    h = x @ weight
    agg = (adj.T @ (h * norm)) * norm
    l2 = jnp.maximum(jnp.linalg.norm(agg, axis=1, keepdims=True), 1e-12)
    return jnp.tanh(agg / l2)


if __name__ == "__main__":
    key = jax.random.PRNGKey(0)
    k_x, k_w, k_src, k_dst = jax.random.split(key, 4)

    N, C_IN, C_OUT, E = 16, 8, 32, 40

    x = jax.random.normal(k_x, (N, C_IN), dtype=jnp.float32)
    weight = jax.random.normal(k_w, (C_IN, C_OUT), dtype=jnp.float32)
    edge_index = jnp.stack(
        [
            jax.random.randint(k_src, (E,), 0, N, dtype=jnp.int32),
            jax.random.randint(k_dst, (E,), 0, N, dtype=jnp.int32),
        ],
        axis=0,
    )

    out = gcn_conv(x, edge_index, weight)
    jax.block_until_ready(out)

    ref = gcn_conv_ref(x, edge_index, weight)
    assert out.shape == (N, C_OUT)
    assert jnp.allclose(out, ref, atol=1e-5, rtol=1e-5), float(
        jnp.max(jnp.abs(out - ref))
    )

    print("KERNEL_OK")
</pallas_src>

<mosaic_0001>
module attributes {stable_mosaic.version = 11 : i64} {
  func.func @gcn_kernel(%arg0: i32, %arg1: i32, %arg2: memref<256x512xbf16, #tpu.memory_space<vmem>>, %arg3: memref<512x8xf32, #tpu.memory_space<vmem>>, %arg4: memref<8x128xf32, #tpu.memory_space<vmem>>, %arg5: memref<256x1xf32, #tpu.memory_space<vmem>>, %arg6: memref<256x128xf32, #tpu.memory_space<vmem>>, %arg7: memref<256x8xf32, #tpu.memory_space<vmem>>) attributes {dimension_semantics = [#tpu.dimension_semantics<parallel>, #tpu.dimension_semantics<arbitrary>], iteration_bounds = array<i64: 2, 1>, scalar_prefetch = 0 : i64, scratch_operands = 1 : i64, tpu.core_type = #tpu.core_type<tc>, window_params = [{transform_indices = @transform_0, window_bounds = array<i64: 256, 512>}, {transform_indices = @transform_1, window_bounds = array<i64: 512, 8>}, {pipeline_mode = #tpu.pipeline_mode<synchronous>, transform_indices = @transform_2, window_bounds = array<i64: 8, 128>}, {transform_indices = @transform_3, window_bounds = array<i64: 256, 1>}, {transform_indices = @transform_4, window_bounds = array<i64: 256, 128>}]} {
    %c0_i32 = arith.constant 0 : i32
    %0 = arith.cmpi eq, %arg1, %c0_i32 : i32
    %1 = arith.extui %0 : i1 to i32
    %c0_i32_0 = arith.constant 0 : i32
    %2 = arith.cmpi ne, %1, %c0_i32_0 : i32
    scf.if %2 {
      %cst_10 = arith.constant 0.000000e+00 : f32
      %13 = vector.broadcast %cst_10 : f32 to vector<256x8xf32>
      %c0_11 = arith.constant 0 : index
      %c0_12 = arith.constant 0 : index
      %14 = vector.load %arg7[%c0_11, %c0_12] : memref<256x8xf32, #tpu.memory_space<vmem>>, vector<256x8xf32>
      tpu.vector_store %arg7[%c0_11, %c0_12], %13 {strides = array<i32>} : memref<256x8xf32, #tpu.memory_space<vmem>>, vector<256x8xf32>,
    } else {
    }
    %c0 = arith.constant 0 : index
    %c0_1 = arith.constant 0 : index
    %3 = vector.load %arg7[%c0, %c0_1] : memref<256x8xf32, #tpu.memory_space<vmem>>, vector<256x8xf32>
    %c0_2 = arith.constant 0 : index
    %c0_3 = arith.constant 0 : index
    %4 = vector.load %arg2[%c0_2, %c0_3] : memref<256x512xbf16, #tpu.memory_space<vmem>>, vector<256x512xbf16>
    %5 = arith.extf %4 : vector<256x512xbf16> to vector<256x512xf32>
    %c0_4 = arith.constant 0 : index
    %c0_5 = arith.constant 0 : index
    %6 = vector.load %arg3[%c0_4, %c0_5] : memref<512x8xf32, #tpu.memory_space<vmem>>, vector<512x8xf32>
    %cst = arith.constant dense<0.000000e+00> : vector<256x8xf32>
    %7 = tpu.matmul %5, %6, %cst {dimension_numbers = #tpu.dot_dimension_numbers<[1], [0], [0], [1], [0, 0, 1, 1], [], []>} : vector<256x512xf32>, vector<512x8xf32>, vector<256x8xf32> -> vector<256x8xf32>
    %8 = arith.addf %3, %7 : vector<256x8xf32>
    %c0_6 = arith.constant 0 : index
    %c0_7 = arith.constant 0 : index
    %9 = vector.load %arg7[%c0_6, %c0_7] : memref<256x8xf32, #tpu.memory_space<vmem>>, vector<256x8xf32>
    tpu.vector_store %arg7[%c0_6, %c0_7], %8 {strides = array<i32>} : memref<256x8xf32, #tpu.memory_space<vmem>>, vector<256x8xf32>,
    %c0_i32_8 = arith.constant 0 : i32
    %10 = arith.cmpi eq, %arg1, %c0_i32_8 : i32
    %11 = arith.extui %10 : i1 to i32
    %c0_i32_9 = arith.constant 0 : i32
    %12 = arith.cmpi ne, %11, %c0_i32_9 : i32
    scf.if %12 {
      %c0_10 = arith.constant 0 : index
      %c0_11 = arith.constant 0 : index
      %13 = vector.load %arg7[%c0_10, %c0_11] : memref<256x8xf32, #tpu.memory_space<vmem>>, vector<256x8xf32>
      %c0_12 = arith.constant 0 : index
      %c0_13 = arith.constant 0 : index
      %14 = vector.load %arg5[%c0_12, %c0_13] : memref<256x1xf32, #tpu.memory_space<vmem>>, vector<256x1xf32>
      %15 = vector.broadcast %14 : vector<256x1xf32> to vector<256x8xf32>
      %16 = arith.mulf %13, %15 : vector<256x8xf32>
      %c0_14 = arith.constant 0 : index
      %c0_15 = arith.constant 0 : index
      %17 = vector.load %arg4[%c0_14, %c0_15] : memref<8x128xf32, #tpu.memory_space<vmem>>, vector<8x128xf32>
      %cst_16 = arith.constant dense<0.000000e+00> : vector<256x128xf32>
      %18 = tpu.matmul %16, %17, %cst_16 {dimension_numbers = #tpu.dot_dimension_numbers<[1], [0], [0], [1], [0, 0, 1, 1], [], []>} : vector<256x8xf32>, vector<8x128xf32>, vector<256x128xf32> -> vector<256x128xf32>
      %19 = arith.mulf %18, %18 : vector<256x128xf32>
      %cst_17 = arith.constant dense<0.000000e+00> : vector<256xf32>
      %20 = vector.multi_reduction <add>, %19, %cst_17 [1] : vector<256x128xf32> to vector<256xf32>
      %21 = vector.shape_cast %20 : vector<256xf32> to vector<256x1xf32>
      %cst_18 = arith.constant 1.000000e-24 : f32
      %22 = vector.broadcast %cst_18 : f32 to vector<256x1xf32>
      %23 = arith.maximumf %21, %22 : vector<256x1xf32>
      %24 = math.rsqrt %23 : vector<256x1xf32>
      %25 = vector.broadcast %24 : vector<256x1xf32> to vector<256x128xf32>
      %26 = arith.mulf %18, %25 : vector<256x128xf32>
      %27 = math.tanh %26 : vector<256x128xf32>
      %c0_19 = arith.constant 0 : index
      %c0_20 = arith.constant 0 : index
      %28 = vector.load %arg6[%c0_19, %c0_20] : memref<256x128xf32, #tpu.memory_space<vmem>>, vector<256x128xf32>
      tpu.vector_store %arg6[%c0_19, %c0_20], %27 {strides = array<i32>} : memref<256x128xf32, #tpu.memory_space<vmem>>, vector<256x128xf32>,
    } else {
    }
    return
  }
  func.func @transform_0(%arg0: i32, %arg1: i32) -> (i32, i32) {
    %c0_i32 = arith.constant 0 : i32
    return %arg0, %arg1 : i32, i32
  }
  func.func @transform_1(%arg0: i32, %arg1: i32) -> (i32, i32) {
    %c0_i32 = arith.constant 0 : i32
    %c0_i32_0 = arith.constant 0 : i32
    return %arg1, %c0_i32 : i32, i32
  }
  func.func @transform_2(%arg0: i32, %arg1: i32) -> (i32, i32) {
    %c0_i32 = arith.constant 0 : i32
    %c0_i32_0 = arith.constant 0 : i32
    %c0_i32_1 = arith.constant 0 : i32
    return %c0_i32, %c0_i32_0 : i32, i32
  }
  func.func @transform_3(%arg0: i32, %arg1: i32) -> (i32, i32) {
    %c0_i32 = arith.constant 0 : i32
    %c0_i32_0 = arith.constant 0 : i32
    return %arg0, %c0_i32 : i32, i32
  }
  func.func @transform_4(%arg0: i32, %arg1: i32) -> (i32, i32) {
    %c0_i32 = arith.constant 0 : i32
    %c0_i32_0 = arith.constant 0 : i32
    return %arg0, %c0_i32 : i32, i32
  }
}

</mosaic_0001>

<llo_original>
// kernel: tpu_custom_call.1
$region0: #{tpu_custom_call.1}
  #allocation0 [shape = 'u32[]', space=smem, size = 0x4, offset = 0x4, fixed_abs, tag = 'smem constant byte address 0x4 - core index']
  #allocation1 [shape = 'u32[144,128]{1,0:T(1,128)}', space=vmem, size = 0x12000, scoped, tag = 'internal scratch']
  #allocation2 [shape = 'f32[256,8]{1,0:T(8,128)}', space=vmem, size = 0x20000, scoped, tag = 'scratch operand']
  %s0 = inlined_call_operand.vmem [shape: bf16[512,512], index: 0, kind: input, shape index: {}]
  %s1 = inlined_call_operand.vmem [shape: f32[512,8], index: 1, kind: input, shape index: {}]
  %s2 = inlined_call_operand.vmem [shape: f32[8,128], index: 2, kind: input, shape index: {}]
  %s3 = inlined_call_operand.vmem [shape: f32[512,1], index: 3, kind: input, shape index: {}]
  %s4 = inlined_call_operand.hbm [shape: f32[512,128], index: 4, kind: output, shape index: {}]
  %s5 = sld [smem:[#allocation0]]
  $region57: #{tpu_custom_call.1} parent=0
    _
  %s7 = ssub.s32 1, %s5
  %s8 = scalar_select 0, %s7, %s5
  $region1: #{tpu_custom_call.1} parent=0
    #allocation3 [shape = 'u8[262144]{0}', space=vmem, size = 0x40000, scoped, tag = 'output window, operand 0']
    #allocation4 [shape = 's32[2]{0}', space=sflag, size = 0x8, scoped, tag = 'scoped memory for tpu_custom_call.1']
    %9 = vsyncpa [#allocation4], 0
    %s10 = scalar_lea.sflag [#allocation4], 1
    %11 = vsyncpa %s10, 0
    loop: start=0, step=1, limit=4
    $region2: #{tpu_custom_call.1} parent=1 // loop_pre_header
      _
    $region3: #{tpu_custom_call.1} parent=1 // loop_header
      %s13 = sphi 0, %s17
      %p14 = scmp.ge.s32.totalorder %s13, 4
      %s20 = sphi 0, %s32
      %s21 = sphi 0, %s28
      %s22 = sphi 0, %s20
      %s23 = sphi 0, %s21
      %s24 = sphi 0, %s22
      %s25 = sphi 0, %s23
      %s37 = sphi 0, %s39
      %s40 = sphi 0, %s37
      %s41 = sphi 0, %s40
      %s57 = sphi 0, %s41
      %s63 = sphi 0, %s65
      %s66 = sphi 0, %s63
      %s67 = sphi 0, %s66
      %s83 = sphi 0, %s67
      %s87 = sphi 0, %s87
      %s89 = sphi 0, %s87
      %s90 = sphi 0, %s89
      %s104 = sphi 0, %s90
      %s110 = sphi 0, %s112
      %s113 = sphi 0, %s110
      %s114 = sphi 0, %s113
      %s130 = sphi 0, %s114
      %s136 = sphi 0, %s138
      %s139 = sphi 0, %s136
      %s140 = sphi 0, %s139
      %s156 = sphi 0, %s140
    $region4: #{tpu_custom_call.1} parent=1 // loop_header_branch
      %16 = sbr.rel (%p14) target = $region8
    $region5: #{tpu_custom_call.1} parent=1 // loop_body
      %s18 = ssub.s32 %s13, 1
      %s19 = ssub.s32 %s13, 2
      %s26 = sadd.s32 1, %s21
      %p27 = scmp.ge.s32.totalorder %s26, 1
      %s28 = scalar_select %p27, 0, %s26
      %s29 = sadd.s32 1, %s20
      %s30 = scalar_select %p27, %s29, %s20
      %p31 = scmp.ge.s32.totalorder %s30, 2
      %s32 = scalar_select %p31, 0, %s30
      %s33 = ssub.s32 %s20, %s32
      %s34 = ssub.s32 %s21, %s28
      %s35 = sor.u32 %s33, %s34
      %p36 = scmp.eq.s32.totalorder %s35, 0
      %s38 = sadd.s32 %s37, 1
      %s39 = scalar_select %p36, %s37, %s38
      %p42 = pneg %p36
      %p43 = scmp.eq.s32.totalorder %s13, 1
      %p44 = por %p42, %p43
      %p45 = scmp.ne.s32.totalorder %s37, %s40
      %p46 = scmp.eq.s32.totalorder %s13, 0
      %p47 = por %p45, %p46
      %p48 = scmp.ne.s32.totalorder %s37, %s40
      %p49 = scmp.eq.s32.totalorder %s18, 1
      %p50 = por %p48, %p49
      %p51 = scmp.ne.s32.totalorder %s40, %s41
      %p52 = scmp.eq.s32.totalorder %s18, 0
      %p53 = por %p51, %p52
      %p54 = scmp.ne.s32.totalorder %s40, %s41
      %p55 = scmp.eq.s32.totalorder %s19, 1
      %p56 = por %p54, %p55
      %p58 = scmp.ne.s32.totalorder %s41, %s57
      %p59 = scmp.eq.s32.totalorder %s19, 0
      %p60 = por %p58, %p59
      %s61 = ssub.s32 %s21, %s28
      %p62 = scmp.eq.s32.totalorder %s61, 0
      %s64 = sadd.s32 %s63, 1
      %s65 = scalar_select %p62, %s63, %s64
      %p68 = pneg %p62
      %p69 = scmp.eq.s32.totalorder %s13, 1
      %p70 = por %p68, %p69
      %p71 = scmp.ne.s32.totalorder %s63, %s66
      %p72 = scmp.eq.s32.totalorder %s13, 0
      %p73 = por %p71, %p72
      %p74 = scmp.ne.s32.totalorder %s63, %s66
      %p75 = scmp.eq.s32.totalorder %s18, 1
      %p76 = por %p74, %p75
      %p77 = scmp.ne.s32.totalorder %s66, %s67
      %p78 = scmp.eq.s32.totalorder %s18, 0
      %p79 = por %p77, %p78
      %p80 = scmp.ne.s32.totalorder %s66, %s67
      %p81 = scmp.eq.s32.totalorder %s19, 1
      %p82 = por %p80, %p81
      %p84 = scmp.ne.s32.totalorder %s67, %s83
      %p85 = scmp.eq.s32.totalorder %s19, 0
      %p86 = por %p84, %p85
      %s88 = sadd.s32 %s87, 1
      %p91 = scmp.eq.s32.totalorder %s13, 1
      %p92 = scmp.ne.s32.totalorder %s87, %s89
      %p93 = scmp.eq.s32.totalorder %s13, 0
      %p94 = por %p92, %p93
      %p95 = scmp.ne.s32.totalorder %s87, %s89
      %p96 = scmp.eq.s32.totalorder %s18, 1
      %p97 = por %p95, %p96
      %p98 = scmp.ne.s32.totalorder %s89, %s90
      %p99 = scmp.eq.s32.totalorder %s18, 0
      %p100 = por %p98, %p99
      %p101 = scmp.ne.s32.totalorder %s89, %s90
      %p102 = scmp.eq.s32.totalorder %s19, 1
      %p103 = por %p101, %p102
      %p105 = scmp.ne.s32.totalorder %s90, %s104
      %p106 = scmp.eq.s32.totalorder %s19, 0
      %p107 = por %p105, %p106
      %s108 = ssub.s32 %s20, %s32
      %p109 = scmp.eq.s32.totalorder %s108, 0
      %s111 = sadd.s32 %s110, 1
      %s112 = scalar_select %p109, %s110, %s111
      %p115 = pneg %p109
      %p116 = scmp.eq.s32.totalorder %s13, 1
      %p117 = por %p115, %p116
      %p118 = scmp.ne.s32.totalorder %s110, %s113
      %p119 = scmp.eq.s32.totalorder %s13, 0
      %p120 = por %p118, %p119
      %p121 = scmp.ne.s32.totalorder %s110, %s113
      %p122 = scmp.eq.s32.totalorder %s18, 1
      %p123 = por %p121, %p122
      %p124 = scmp.ne.s32.totalorder %s113, %s114
      %p125 = scmp.eq.s32.totalorder %s18, 0
      %p126 = por %p124, %p125
      %p127 = scmp.ne.s32.totalorder %s113, %s114
      %p128 = scmp.eq.s32.totalorder %s19, 1
      %p129 = por %p127, %p128
      %p131 = scmp.ne.s32.totalorder %s114, %s130
      %p132 = scmp.eq.s32.totalorder %s19, 0
      %p133 = por %p131, %p132
      %s134 = ssub.s32 %s20, %s32
      %p135 = scmp.eq.s32.totalorder %s134, 0
      %s137 = sadd.s32 %s136, 1
      %s138 = scalar_select %p135, %s136, %s137
      %p141 = pneg %p135
      %p142 = scmp.eq.s32.totalorder %s13, 1
      %p143 = por %p141, %p142
      %p144 = scmp.ne.s32.totalorder %s136, %s139
      %p145 = scmp.eq.s32.totalorder %s13, 0
      %p146 = por %p144, %p145
      %p147 = scmp.ne.s32.totalorder %s136, %s139
      %p148 = scmp.eq.s32.totalorder %s18, 1
      %p149 = por %p147, %p148
      %p150 = scmp.ne.s32.totalorder %s139, %s140
      %p151 = scmp.eq.s32.totalorder %s18, 0
      %p152 = por %p150, %p151
      %p153 = scmp.ne.s32.totalorder %s139, %s140
      %p154 = scmp.eq.s32.totalorder %s19, 1
      %p155 = por %p153, %p154
      %p157 = scmp.ne.s32.totalorder %s140, %s156
      %p158 = scmp.eq.s32.totalorder %s19, 0
      %p159 = por %p157, %p158
      %p160 = scmp.le.s32.totalorder 1, %s13
      %p161 = scmp.lt.s32.totalorder %s13, 3
      %p162 = pnand %p160, %p161
      %p163 = pneg %p162
      // Predicated region
      $region9: #{tpu_custom_call.1} parent=5 // pred_check
        _
      $region10: #{tpu_custom_call.1} parent=5 // pred_check_branch
        %165 = sbr.rel (%p162) target = $region12
      $region11: #{tpu_custom_call.1} parent=5 // pred_region
        %s166 = ssub.s32 %s13, 1
        // Predicated region
        $region13: #{tpu_custom_call.1} parent=11 // pred_check
          %p167 = pneg %p79
        $region14: #{tpu_custom_call.1} parent=11 // pred_check_branch
          %169 = sbr.rel (%p167) target = $region16
        $region15: #{tpu_custom_call.1} parent=11 // pred_region
          %s170 = smul.u32 64, %s23
          %p171 = scmp.lt.s32.totalorder %s170, 63
          %s172 = scalar_select %p171, %s170, 63
          %s173 = smul.addr %s172, 8
          %s174 = scalar_lea.vmem %s1, %s173
          %s175 = smul.u32 64, %s23
        $region16: #{tpu_custom_call.1} parent=11 // pred_fallthru
          _
        // Predicated region
        $region17: #{tpu_custom_call.1} parent=11 // pred_check
          %p176 = pneg %p100
        $region18: #{tpu_custom_call.1} parent=11 // pred_check_branch
          %178 = sbr.rel (%p176) target = $region20
        $region19: #{tpu_custom_call.1} parent=11 // pred_region
          _
        $region20: #{tpu_custom_call.1} parent=11 // pred_fallthru
          _
      $region12: #{tpu_custom_call.1} parent=5 // pred_fallthru
        _
      %p179 = scmp.lt.s32.totalorder %s13, 2
      // Predicated region
      $region21: #{tpu_custom_call.1} parent=5 // pred_check
        %p180 = pneg %p179
      $region22: #{tpu_custom_call.1} parent=5 // pred_check_branch
        %182 = sbr.rel (%p180) target = $region24
      $region23: #{tpu_custom_call.1} parent=5 // pred_region
        // Predicated region
        $region25: #{tpu_custom_call.1} parent=23 // pred_check
          %p183 = pneg %p47
        $region26: #{tpu_custom_call.1} parent=23 // pred_check_branch
          %185 = sbr.rel (%p183) target = $region28
        $region27: #{tpu_custom_call.1} parent=23 // pred_region
          %s186 = smul.u32 32, %s20
          %s187 = smul.u32 4, %s21
          %p188 = scmp.lt.s32.totalorder %s186, 63
          %s189 = scalar_select %p188, %s186, 63
          %p190 = scmp.lt.s32.totalorder %s187, 3
          %s191 = scalar_select %p190, %s187, 3
          %s192 = smul.addr %s189, 4
          %s193 = sadd.s32 %s191, %s192
          %s194 = smul.addr %s193, 4
          %s195 = scalar_lea.vmem %s0, %s194
          %s196 = smul.u32 32, %s20
          %s197 = smul.u32 4, %s21
        $region28: #{tpu_custom_call.1} parent=23 // pred_fallthru
          _
        // Predicated region
        $region29: #{tpu_custom_call.1} parent=23 // pred_check
          %p198 = pneg %p120
        $region30: #{tpu_custom_call.1} parent=23 // pred_check_branch
          %200 = sbr.rel (%p198) target = $region32
        $region31: #{tpu_custom_call.1} parent=23 // pred_region
          %s201 = smul.u32 32, %s20
          %p202 = scmp.lt.s32.totalorder %s201, 63
          %s203 = scalar_select %p202, %s201, 63
          %s204 = smul.addr %s203, 8
          %s205 = scalar_lea.vmem %s3, %s204
          %s206 = smul.u32 32, %s20
        $region32: #{tpu_custom_call.1} parent=23 // pred_fallthru
          _
      $region24: #{tpu_custom_call.1} parent=5 // pred_fallthru
        _
      %p207 = scmp.le.s32.totalorder 1, %s13
      %p208 = scmp.lt.s32.totalorder %s13, 3
      %p209 = pnand %p207, %p208
      %p210 = pneg %p209
      // Predicated region
      $region33: #{tpu_custom_call.1} parent=5 // pred_check
        _
      $region34: #{tpu_custom_call.1} parent=5 // pred_check_branch
        %212 = sbr.rel (%p209) target = $region36
      $region35: #{tpu_custom_call.1} parent=5 // pred_region
        %s213 = ssub.s32 %s13, 1
        %s214 = smul.u32 32, %s22
        %s215 = smul.u32 4, %s23
        %p216 = scmp.lt.s32.totalorder %s214, 63
        %s217 = scalar_select %p216, %s214, 63
        %p218 = scmp.lt.s32.totalorder %s215, 3
        %s219 = scalar_select %p218, %s215, 3
        %s220 = smul.addr %s217, 4
        %s221 = sadd.s32 %s219, %s220
        %s222 = smul.addr %s221, 4
        %s223 = scalar_lea.vmem %s0, %s222
        %p224 = pneg %p53
        %p225 = pneg %p50
        %s226 = smul.u32 64, %s23
        %p227 = scmp.lt.s32.totalorder %s226, 63
        %s228 = scalar_select %p227, %s226, 63
        %s229 = smul.addr %s228, 8
        %s230 = scalar_lea.vmem %s1, %s229
        %p231 = pneg %p79
        %p232 = pneg %p76
        %p233 = pneg %p100
        %p234 = pneg %p97
        %s235 = smul.u32 32, %s22
        %p236 = scmp.lt.s32.totalorder %s235, 63
        %s237 = scalar_select %p236, %s235, 63
        %s238 = smul.addr %s237, 8
        %s239 = scalar_lea.vmem %s3, %s238
        %p240 = pneg %p126
        %p241 = pneg %p123
        %p242 = pneg %p152
        %p243 = pneg %p149
        %s244 = sand.u32 %s139, 1
        %s245 = scalar_lea.sflag [#allocation4], %s244
        %s246 = sand.u32 %s139, 1
        %s247 = smul.addr %s246, 256
        %s248 = scalar_lea.vmem [#allocation3], %s247
        %s249 = smul.u32 32, %s22
        %s250 = smul.u32 4, %s23
        %p251 = scmp.lt.s32.totalorder %s249, 63
        %s252 = scalar_select %p251, %s249, 63
        %p253 = scmp.lt.s32.totalorder %s250, 3
        %s254 = scalar_select %p253, %s250, 3
        %s255 = smul.addr %s252, 4
        %s256 = sadd.s32 %s254, %s255
        %s257 = smul.addr %s256, 4
        %s258 = scalar_lea.vmem %s0, %s257
        %s259 = smul.u32 32, %s22
        %s260 = smul.u32 4, %s23
        %s261 = smul.u32 64, %s23
        %p262 = scmp.lt.s32.totalorder %s261, 63
        %s263 = scalar_select %p262, %s261, 63
        %s264 = smul.addr %s263, 8
        %s265 = scalar_lea.vmem %s1, %s264
        %s266 = smul.u32 64, %s23
        %s267 = smul.u32 32, %s22
        %p268 = scmp.lt.s32.totalorder %s267, 63
        %s269 = scalar_select %p268, %s267, 63
        %s270 = smul.addr %s269, 8
        %s271 = scalar_lea.vmem %s3, %s270
        %s272 = smul.u32 32, %s22
        %s273 = smul.u32 32, %s22
        %p274 = scmp.eq.s32.totalorder %s23, 0
        // Predicated region
        $region37: #{tpu_custom_call.1} parent=35 // pred_check
          %p275 = pneg %p274
        $region38: #{tpu_custom_call.1} parent=35 // pred_check_branch
          %277 = sbr.rel (%p275) target = $region40
        $region39: #{tpu_custom_call.1} parent=35 // pred_region
          %vm278 = vcmask 64512
          %279 = vst.msk [vmem:[#allocation2] sm:$0xff] %vm278, 0.0
          %280 = vst.msk [vmem:[#allocation2 + $0x8] sm:$0xff] %vm278, 0.0
          %281 = vst.msk [vmem:[#allocation2 + $0x10] sm:$0xff] %vm278, 0.0
          %282 = vst.msk [vmem:[#allocation2 + $0x18] sm:$0xff] %vm278, 0.0
          %283 = vst.msk [vmem:[#allocation2 + $0x20] sm:$0xff] %vm278, 0.0
          %284 = vst.msk [vmem:[#allocation2 + $0x28] sm:$0xff] %vm278, 0.0
          %285 = vst.msk [vmem:[#allocation2 + $0x30] sm:$0xff] %vm278, 0.0
          %286 = vst.msk [vmem:[#allocation2 + $0x38] sm:$0xff] %vm278, 0.0
          %287 = vst.msk [vmem:[#allocation2 + $0x40] sm:$0xff] %vm278, 0.0
          %288 = vst.msk [vmem:[#allocation2 + $0x48] sm:$0xff] %vm278, 0.0
          %289 = vst.msk [vmem:[#allocation2 + $0x50] sm:$0xff] %vm278, 0.0
          %290 = vst.msk [vmem:[#allocation2 + $0x58] sm:$0xff] %vm278, 0.0
          %291 = vst.msk [vmem:[#allocation2 + $0x60] sm:$0xff] %vm278, 0.0
          %292 = vst.msk [vmem:[#allocation2 + $0x68] sm:$0xff] %vm278, 0.0
          %293 = vst.msk [vmem:[#allocation2 + $0x70] sm:$0xff] %vm278, 0.0
          %294 = vst.msk [vmem:[#allocation2 + $0x78] sm:$0xff] %vm278, 0.0
          %295 = vst.msk [vmem:[#allocation2 + $0x80] sm:$0xff] %vm278, 0.0
          %296 = vst.msk [vmem:[#allocation2 + $0x88] sm:$0xff] %vm278, 0.0
          %297 = vst.msk [vmem:[#allocation2 + $0x90] sm:$0xff] %vm278, 0.0
          %298 = vst.msk [vmem:[#allocation2 + $0x98] sm:$0xff] %vm278, 0.0
          %299 = vst.msk [vmem:[#allocation2 + $0xa0] sm:$0xff] %vm278, 0.0
          %300 = vst.msk [vmem:[#allocation2 + $0xa8] sm:$0xff] %vm278, 0.0
          %301 = vst.msk [vmem:[#allocation2 + $0xb0] sm:$0xff] %vm278, 0.0
          %302 = vst.msk [vmem:[#allocation2 + $0xb8] sm:$0xff] %vm278, 0.0
          %303 = vst.msk [vmem:[#allocation2 + $0xc0] sm:$0xff] %vm278, 0.0
          %304 = vst.msk [vmem:[#allocation2 + $0xc8] sm:$0xff] %vm278, 0.0
          %305 = vst.msk [vmem:[#allocation2 + $0xd0] sm:$0xff] %vm278, 0.0
          %306 = vst.msk [vmem:[#allocation2 + $0xd8] sm:$0xff] %vm278, 0.0
          %307 = vst.msk [vmem:[#allocation2 + $0xe0] sm:$0xff] %vm278, 0.0
          %308 = vst.msk [vmem:[#allocation2 + $0xe8] sm:$0xff] %vm278, 0.0
          %309 = vst.msk [vmem:[#allocation2 + $0xf0] sm:$0xff] %vm278, 0.0
          %310 = vst.msk [vmem:[#allocation2 + $0xf8] sm:$0xff] %vm278, 0.0
        $region40: #{tpu_custom_call.1} parent=35 // pred_fallthru
          _
        %v311 = vld [vmem:[#allocation2] sm:$0xff]
        %v312 = vld [vmem:[#allocation2 + $0x8] sm:$0xff]
        %v313 = vld [vmem:[#allocation2 + $0x10] sm:$0xff]
        %v314 = vld [vmem:[#allocation2 + $0x18] sm:$0xff]
        %v315 = vld [vmem:[#allocation2 + $0x20] sm:$0xff]
        %v316 = vld [vmem:[#allocation2 + $0x28] sm:$0xff]
        %v317 = vld [vmem:[#allocation2 + $0x30] sm:$0xff]
        %v318 = vld [vmem:[#allocation2 + $0x38] sm:$0xff]
        %v319 = vld [vmem:[#allocation2 + $0x40] sm:$0xff]
        %v320 = vld [vmem:[#allocation2 + $0x48] sm:$0xff]
        %v321 = vld [vmem:[#allocation2 + $0x50] sm:$0xff]
        %v322 = vld [vmem:[#allocation2 + $0x58] sm:$0xff]
        %v323 = vld [vmem:[#allocation2 + $0x60] sm:$0xff]
        %v324 = vld [vmem:[#allocation2 + $0x68] sm:$0xff]
        %v325 = vld [vmem:[#allocation2 + $0x70] sm:$0xff]
        %v326 = vld [vmem:[#allocation2 + $0x78] sm:$0xff]
        %v327 = vld [vmem:[#allocation2 + $0x80] sm:$0xff]
        %v328 = vld [vmem:[#allocation2 + $0x88] sm:$0xff]
        %v329 = vld [vmem:[#allocation2 + $0x90] sm:$0xff]
        %v330 = vld [vmem:[#allocation2 + $0x98] sm:$0xff]
        %v331 = vld [vmem:[#allocation2 + $0xa0] sm:$0xff]
        %v332 = vld [vmem:[#allocation2 + $0xa8] sm:$0xff]
        %v333 = vld [vmem:[#allocation2 + $0xb0] sm:$0xff]
        %v334 = vld [vmem:[#allocation2 + $0xb8] sm:$0xff]
        %v335 = vld [vmem:[#allocation2 + $0xc0] sm:$0xff]
        %v336 = vld [vmem:[#allocation2 + $0xc8] sm:$0xff]
        %v337 = vld [vmem:[#allocation2 + $0xd0] sm:$0xff]
        %v338 = vld [vmem:[#allocation2 + $0xd8] sm:$0xff]
        %v339 = vld [vmem:[#allocation2 + $0xe0] sm:$0xff]
        %v340 = vld [vmem:[#allocation2 + $0xe8] sm:$0xff]
        %v341 = vld [vmem:[#allocation2 + $0xf0] sm:$0xff]
        %v342 = vld [vmem:[#allocation2 + $0xf8] sm:$0xff]
        %v343 = vld [vmem:[%s258] sm:$0xff]
        %v344 = vld [vmem:[%s258 + $0x8] sm:$0xff]
        %v345 = vld [vmem:[%s258 + $0x10] sm:$0xff]
        %v346 = vld [vmem:[%s258 + $0x18] sm:$0xff]
        %v347 = vld [vmem:[%s258 + $0x20] sm:$0xff]
        %v348 = vld [vmem:[%s258 + $0x28] sm:$0xff]
        %v349 = vld [vmem:[%s258 + $0x30] sm:$0xff]
        %v350 = vld [vmem:[%s258 + $0x38] sm:$0xff]
        %v351 = vld [vmem:[%s258 + $0x40] sm:$0xff]
        %v352 = vld [vmem:[%s258 + $0x48] sm:$0xff]
        %v353 = vld [vmem:[%s258 + $0x50] sm:$0xff]
        %v354 = vld [vmem:[%s258 + $0x58] sm:$0xff]
        %v355 = vld [vmem:[%s258 + $0x60] sm:$0xff]
        %v356 = vld [vmem:[%s258 + $0x68] sm:$0xff]
        %v357 = vld [vmem:[%s258 + $0x70] sm:$0xff]
        %v358 = vld [vmem:[%s258 + $0x78] sm:$0xff]
        %v359 = vld [vmem:[%s258 + $0x80] sm:$0xff]
        %v360 = vld [vmem:[%s258 + $0x88] sm:$0xff]
        %v361 = vld [vmem:[%s258 + $0x90] sm:$0xff]
        %v362 = vld [vmem:[%s258 + $0x98] sm:$0xff]
        %v363 = vld [vmem:[%s258 + $0xa0] sm:$0xff]
        %v364 = vld [vmem:[%s258 + $0xa8] sm:$0xff]
        %v365 = vld [vmem:[%s258 + $0xb0] sm:$0xff]
        %v366 = vld [vmem:[%s258 + $0xb8] sm:$0xff]
        %v367 = vld [vmem:[%s258 + $0xc0] sm:$0xff]
        %v368 = vld [vmem:[%s258 + $0xc8] sm:$0xff]
        %v369 = vld [vmem:[%s258 + $0xd0] sm:$0xff]
        %v370 = vld [vmem:[%s258 + $0xd8] sm:$0xff]
        %v371 = vld [vmem:[%s258 + $0xe0] sm:$0xff]
        %v372 = vld [vmem:[%s258 + $0xe8] sm:$0xff]
        %v373 = vld [vmem:[%s258 + $0xf0] sm:$0xff]
        %v374 = vld [vmem:[%s258 + $0xf8] sm:$0xff]
        %v375 = vld [vmem:[%s258 + $0x100] sm:$0xff]
        %v376 = vld [vmem:[%s258 + $0x108] sm:$0xff]
        %v377 = vld [vmem:[%s258 + $0x110] sm:$0xff]
        %v378 = vld [vmem:[%s258 + $0x118] sm:$0xff]
        %v379 = vld [vmem:[%s258 + $0x120] sm:$0xff]
        %v380 = vld [vmem:[%s258 + $0x128] sm:$0xff]
        %v381 = vld [vmem:[%s258 + $0x130] sm:$0xff]
        %v382 = vld [vmem:[%s258 + $0x138] sm:$0xff]
        %v383 = vld [vmem:[%s258 + $0x140] sm:$0xff]
        %v384 = vld [vmem:[%s258 + $0x148] sm:$0xff]
        %v385 = vld [vmem:[%s258 + $0x150] sm:$0xff]
        %v386 = vld [vmem:[%s258 + $0x158] sm:$0xff]
        %v387 = vld [vmem:[%s258 + $0x160] sm:$0xff]
        %v388 = vld [vmem:[%s258 + $0x168] sm:$0xff]
        %v389 = vld [vmem:[%s258 + $0x170] sm:$0xff]
        %v390 = vld [vmem:[%s258 + $0x178] sm:$0xff]
        %v391 = vld [vmem:[%s258 + $0x180] sm:$0xff]
        %v392 = vld [vmem:[%s258 + $0x188] sm:$0xff]
        %v393 = vld [vmem:[%s258 + $0x190] sm:$0xff]
        %v394 = vld [vmem:[%s258 + $0x198] sm:$0xff]
        %v395 = vld [vmem:[%s258 + $0x1a0] sm:$0xff]
        %v396 = vld [vmem:[%s258 + $0x1a8] sm:$0xff]
        %v397 = vld [vmem:[%s258 + $0x1b0] sm:$0xff]
        %v398 = vld [vmem:[%s258 + $0x1b8] sm:$0xff]
        %v399 = vld [vmem:[%s258 + $0x1c0] sm:$0xff]
        %v400 = vld [vmem:[%s258 + $0x1c8] sm:$0xff]
        %v401 = vld [vmem:[%s258 + $0x1d0] sm:$0xff]
        %v402 = vld [vmem:[%s258 + $0x1d8] sm:$0xff]
        %v403 = vld [vmem:[%s258 + $0x1e0] sm:$0xff]
        %v404 = vld [vmem:[%s258 + $0x1e8] sm:$0xff]
        %v405 = vld [vmem:[%s258 + $0x1f0] sm:$0xff]
        %v406 = vld [vmem:[%s258 + $0x1f8] sm:$0xff]
        %v407 = vunpack.c.l.bf16 %v343
        %v408 = vunpack.c.h.bf16 %v343
        %v409 = vunpack.c.l.bf16 %v344
        %v410 = vunpack.c.h.bf16 %v344
        %v411 = vunpack.c.l.bf16 %v345
        %v412 = vunpack.c.h.bf16 %v345
        %v413 = vunpack.c.l.bf16 %v346
        %v414 = vunpack.c.h.bf16 %v346
        %v415 = vunpack.c.l.bf16 %v347
        %v416 = vunpack.c.h.bf16 %v347
        %v417 = vunpack.c.l.bf16 %v348
        %v418 = vunpack.c.h.bf16 %v348
        %v419 = vunpack.c.l.bf16 %v349
        %v420 = vunpack.c.h.bf16 %v349
        %v421 = vunpack.c.l.bf16 %v350
        %v422 = vunpack.c.h.bf16 %v350
        %v423 = vunpack.c.l.bf16 %v351
        %v424 = vunpack.c.h.bf16 %v351
        %v425 = vunpack.c.l.bf16 %v352
        %v426 = vunpack.c.h.bf16 %v352
        %v427 = vunpack.c.l.bf16 %v353
        %v428 = vunpack.c.h.bf16 %v353
        %v429 = vunpack.c.l.bf16 %v354
        %v430 = vunpack.c.h.bf16 %v354
        %v431 = vunpack.c.l.bf16 %v355
        %v432 = vunpack.c.h.bf16 %v355
        %v433 = vunpack.c.l.bf16 %v356
        %v434 = vunpack.c.h.bf16 %v356
        %v435 = vunpack.c.l.bf16 %v357
        %v436 = vunpack.c.h.bf16 %v357
        %v437 = vunpack.c.l.bf16 %v358
        %v438 = vunpack.c.h.bf16 %v358
        %v439 = vunpack.c.l.bf16 %v359
        %v440 = vunpack.c.h.bf16 %v359
        %v441 = vunpack.c.l.bf16 %v360
        %v442 = vunpack.c.h.bf16 %v360
        %v443 = vunpack.c.l.bf16 %v361
        %v444 = vunpack.c.h.bf16 %v361
        %v445 = vunpack.c.l.bf16 %v362
        %v446 = vunpack.c.h.bf16 %v362
        %v447 = vunpack.c.l.bf16 %v363
        %v448 = vunpack.c.h.bf16 %v363
        %v449 = vunpack.c.l.bf16 %v364
        %v450 = vunpack.c.h.bf16 %v364
        %v451 = vunpack.c.l.bf16 %v365
        %v452 = vunpack.c.h.bf16 %v365
        %v453 = vunpack.c.l.bf16 %v366
        %v454 = vunpack.c.h.bf16 %v366
        %v455 = vunpack.c.l.bf16 %v367
        %v456 = vunpack.c.h.bf16 %v367
        %v457 = vunpack.c.l.bf16 %v368
        %v458 = vunpack.c.h.bf16 %v368
        %v459 = vunpack.c.l.bf16 %v369
        %v460 = vunpack.c.h.bf16 %v369
        %v461 = vunpack.c.l.bf16 %v370
        %v462 = vunpack.c.h.bf16 %v370
        %v463 = vunpack.c.l.bf16 %v371
        %v464 = vunpack.c.h.bf16 %v371
        %v465 = vunpack.c.l.bf16 %v372
        %v466 = vunpack.c.h.bf16 %v372
        %v467 = vunpack.c.l.bf16 %v373
        %v468 = vunpack.c.h.bf16 %v373
        %v469 = vunpack.c.l.bf16 %v374
        %v470 = vunpack.c.h.bf16 %v374
        %v471 = vunpack.c.l.bf16 %v375
        %v472 = vunpack.c.h.bf16 %v375
        %v473 = vunpack.c.l.bf16 %v376
        %v474 = vunpack.c.h.bf16 %v376
        %v475 = vunpack.c.l.bf16 %v377
        %v476 = vunpack.c.h.bf16 %v377
        %v477 = vunpack.c.l.bf16 %v378
        %v478 = vunpack.c.h.bf16 %v378
        %v479 = vunpack.c.l.bf16 %v379
        %v480 = vunpack.c.h.bf16 %v379
        %v481 = vunpack.c.l.bf16 %v380
        %v482 = vunpack.c.h.bf16 %v380
        %v483 = vunpack.c.l.bf16 %v381
        %v484 = vunpack.c.h.bf16 %v381
        %v485 = vunpack.c.l.bf16 %v382
        %v486 = vunpack.c.h.bf16 %v382
        %v487 = vunpack.c.l.bf16 %v383
        %v488 = vunpack.c.h.bf16 %v383
        %v489 = vunpack.c.l.bf16 %v384
        %v490 = vunpack.c.h.bf16 %v384
        %v491 = vunpack.c.l.bf16 %v385
        %v492 = vunpack.c.h.bf16 %v385
        %v493 = vunpack.c.l.bf16 %v386
        %v494 = vunpack.c.h.bf16 %v386
        %v495 = vunpack.c.l.bf16 %v387
        %v496 = vunpack.c.h.bf16 %v387
        %v497 = vunpack.c.l.bf16 %v388
        %v498 = vunpack.c.h.bf16 %v388
        %v499 = vunpack.c.l.bf16 %v389
        %v500 = vunpack.c.h.bf16 %v389
        %v501 = vunpack.c.l.bf16 %v390
        %v502 = vunpack.c.h.bf16 %v390
        %v503 = vunpack.c.l.bf16 %v391
        %v504 = vunpack.c.h.bf16 %v391
        %v505 = vunpack.c.l.bf16 %v392
        %v506 = vunpack.c.h.bf16 %v392
        %v507 = vunpack.c.l.bf16 %v393
        %v508 = vunpack.c.h.bf16 %v393
        %v509 = vunpack.c.l.bf16 %v394
        %v510 = vunpack.c.h.bf16 %v394
        %v511 = vunpack.c.l.bf16 %v395
        %v512 = vunpack.c.h.bf16 %v395
        %v513 = vunpack.c.l.bf16 %v396
        %v514 = vunpack.c.h.bf16 %v396
        %v515 = vunpack.c.l.bf16 %v397
        %v516 = vunpack.c.h.bf16 %v397
        %v517 = vunpack.c.l.bf16 %v398
        %v518 = vunpack.c.h.bf16 %v398
        %v519 = vunpack.c.l.bf16 %v399
        %v520 = vunpack.c.h.bf16 %v399
        %v521 = vunpack.c.l.bf16 %v400
        %v522 = vunpack.c.h.bf16 %v400
        %v523 = vunpack.c.l.bf16 %v401
        %v524 = vunpack.c.h.bf16 %v401
        %v525 = vunpack.c.l.bf16 %v402
        %v526 = vunpack.c.h.bf16 %v402
        %v527 = vunpack.c.l.bf16 %v403
        %v528 = vunpack.c.h.bf16 %v403
        %v529 = vunpack.c.l.bf16 %v404
        %v530 = vunpack.c.h.bf16 %v404
        %v531 = vunpack.c.l.bf16 %v405
        %v532 = vunpack.c.h.bf16 %v405
        %v533 = vunpack.c.l.bf16 %v406
        %v534 = vunpack.c.h.bf16 %v406
        %v535 = vld [vmem:[%s265] sm:$0xff]
        %v536 = vld [vmem:[%s265 + $0x8] sm:$0xff]
        %v537 = vld [vmem:[%s265 + $0x10] sm:$0xff]
        %v538 = vld [vmem:[%s265 + $0x18] sm:$0xff]
        %v539 = vld [vmem:[%s265 + $0x20] sm:$0xff]
        %v540 = vld [vmem:[%s265 + $0x28] sm:$0xff]
        %v541 = vld [vmem:[%s265 + $0x30] sm:$0xff]
        %v542 = vld [vmem:[%s265 + $0x38] sm:$0xff]
        %v543 = vld [vmem:[%s265 + $0x40] sm:$0xff]
        %v544 = vld [vmem:[%s265 + $0x48] sm:$0xff]
        %v545 = vld [vmem:[%s265 + $0x50] sm:$0xff]
        %v546 = vld [vmem:[%s265 + $0x58] sm:$0xff]
        %v547 = vld [vmem:[%s265 + $0x60] sm:$0xff]
        %v548 = vld [vmem:[%s265 + $0x68] sm:$0xff]
        %v549 = vld [vmem:[%s265 + $0x70] sm:$0xff]
        %v550 = vld [vmem:[%s265 + $0x78] sm:$0xff]
        %v551 = vld [vmem:[%s265 + $0x80] sm:$0xff]
        %v552 = vld [vmem:[%s265 + $0x88] sm:$0xff]
        %v553 = vld [vmem:[%s265 + $0x90] sm:$0xff]
        %v554 = vld [vmem:[%s265 + $0x98] sm:$0xff]
        %v555 = vld [vmem:[%s265 + $0xa0] sm:$0xff]
        %v556 = vld [vmem:[%s265 + $0xa8] sm:$0xff]
        %v557 = vld [vmem:[%s265 + $0xb0] sm:$0xff]
        %v558 = vld [vmem:[%s265 + $0xb8] sm:$0xff]
        %v559 = vld [vmem:[%s265 + $0xc0] sm:$0xff]
        %v560 = vld [vmem:[%s265 + $0xc8] sm:$0xff]
        %v561 = vld [vmem:[%s265 + $0xd0] sm:$0xff]
        %v562 = vld [vmem:[%s265 + $0xd8] sm:$0xff]
        %v563 = vld [vmem:[%s265 + $0xe0] sm:$0xff]
        %v564 = vld [vmem:[%s265 + $0xe8] sm:$0xff]
        %v565 = vld [vmem:[%s265 + $0xf0] sm:$0xff]
        %v566 = vld [vmem:[%s265 + $0xf8] sm:$0xff]
        %v567 = vld [vmem:[%s265 + $0x100] sm:$0xff]
        %v568 = vld [vmem:[%s265 + $0x108] sm:$0xff]
        %v569 = vld [vmem:[%s265 + $0x110] sm:$0xff]
        %v570 = vld [vmem:[%s265 + $0x118] sm:$0xff]
        %v571 = vld [vmem:[%s265 + $0x120] sm:$0xff]
        %v572 = vld [vmem:[%s265 + $0x128] sm:$0xff]
        %v573 = vld [vmem:[%s265 + $0x130] sm:$0xff]
        %v574 = vld [vmem:[%s265 + $0x138] sm:$0xff]
        %v575 = vld [vmem:[%s265 + $0x140] sm:$0xff]
        %v576 = vld [vmem:[%s265 + $0x148] sm:$0xff]
        %v577 = vld [vmem:[%s265 + $0x150] sm:$0xff]
        %v578 = vld [vmem:[%s265 + $0x158] sm:$0xff]
        %v579 = vld [vmem:[%s265 + $0x160] sm:$0xff]
        %v580 = vld [vmem:[%s265 + $0x168] sm:$0xff]
        %v581 = vld [vmem:[%s265 + $0x170] sm:$0xff]
        %v582 = vld [vmem:[%s265 + $0x178] sm:$0xff]
        %v583 = vld [vmem:[%s265 + $0x180] sm:$0xff]
        %v584 = vld [vmem:[%s265 + $0x188] sm:$0xff]
        %v585 = vld [vmem:[%s265 + $0x190] sm:$0xff]
        %v586 = vld [vmem:[%s265 + $0x198] sm:$0xff]
        %v587 = vld [vmem:[%s265 + $0x1a0] sm:$0xff]
        %v588 = vld [vmem:[%s265 + $0x1a8] sm:$0xff]
        %v589 = vld [vmem:[%s265 + $0x1b0] sm:$0xff]
        %v590 = vld [vmem:[%s265 + $0x1b8] sm:$0xff]
        %v591 = vld [vmem:[%s265 + $0x1c0] sm:$0xff]
        %v592 = vld [vmem:[%s265 + $0x1c8] sm:$0xff]
        %v593 = vld [vmem:[%s265 + $0x1d0] sm:$0xff]
        %v594 = vld [vmem:[%s265 + $0x1d8] sm:$0xff]
        %v595 = vld [vmem:[%s265 + $0x1e0] sm:$0xff]
        %v596 = vld [vmem:[%s265 + $0x1e8] sm:$0xff]
        %v597 = vld [vmem:[%s265 + $0x1f0] sm:$0xff]
        %v598 = vld [vmem:[%s265 + $0x1f8] sm:$0xff]
        %599 = vmatprep.subr.mxu0 0.0
        %600 = vmatpush1.msra.mxu0 %v535
        %601 = vmatprep.subr.mxu0 0.0
        %602 = vmatpush1.msra.mxu0 %v536
        %603 = vmatprep.subr.mxu0 0.0
        %604 = vmatpush1.msra.mxu0 %v537
        %605 = vmatprep.subr.mxu0 0.0
        %606 = vmatpush1.msra.mxu0 %v538
        %607 = vmatprep.subr.mxu0 0.0
        %608 = vmatpush1.msra.mxu0 %v539
        %609 = vmatprep.subr.mxu0 0.0
        %610 = vmatpush1.msra.mxu0 %v540
        %611 = vmatprep.subr.mxu0 0.0
        %612 = vmatpush1.msra.mxu0 %v541
        %613 = vmatprep.subr.mxu0 0.0
        %614 = vmatpush1.msra.mxu0 %v542
        %615 = vmatprep.subr.mxu0 0.0
        %616 = vmatpush1.msra.mxu0 %v543
        %617 = vmatprep.subr.mxu0 0.0
        %618 = vmatpush1.msra.mxu0 %v544
        %619 = vmatprep.subr.mxu0 0.0
        %620 = vmatpush1.msra.mxu0 %v545
        %621 = vmatprep.subr.mxu0 0.0
        %622 = vmatpush1.msra.mxu0 %v546
        %623 = vmatprep.subr.mxu0 0.0
        %624 = vmatpush1.msra.mxu0 %v547
        %625 = vmatprep.subr.mxu0 0.0
        %626 = vmatpush1.msra.mxu0 %v548
        %627 = vmatprep.subr.mxu0 0.0
        %628 = vmatpush1.msra.mxu0 %v549
        %629 = vmatprep.subr.mxu0 0.0
        %630 = vmatpush1.msra.mxu0 %v550
        %631 = vmatprep.subr.mxu0 0.0
        %632 = vmatpush1.msra.mxu0 %v551
        %633 = vmatprep.subr.mxu0 0.0
        %634 = vmatpush1.msra.mxu0 %v552
        %635 = vmatprep.subr.mxu0 0.0
        %636 = vmatpush1.msra.mxu0 %v553
        %637 = vmatprep.subr.mxu0 0.0
        %638 = vmatpush1.msra.mxu0 %v554
        %639 = vmatprep.subr.mxu0 0.0
        %640 = vmatpush1.msra.mxu0 %v555
        %641 = vmatprep.subr.mxu0 0.0
        %642 = vmatpush1.msra.mxu0 %v556
        %643 = vmatprep.subr.mxu0 0.0
        %644 = vmatpush1.msra.mxu0 %v557
        %645 = vmatprep.subr.mxu0 0.0
        %646 = vmatpush1.msra.mxu0 %v558
        %647 = vmatprep.subr.mxu0 0.0
        %648 = vmatpush1.msra.mxu0 %v559
        %649 = vmatprep.subr.mxu0 0.0
        %650 = vmatpush1.msra.mxu0 %v560
        %651 = vmatprep.subr.mxu0 0.0
        %652 = vmatpush1.msra.mxu0 %v561
        %653 = vmatprep.subr.mxu0 0.0
        %654 = vmatpush1.msra.mxu0 %v562
        %655 = vmatprep.subr.mxu0 0.0
        %656 = vmatpush1.msra.mxu0 %v563
        %657 = vmatprep.subr.mxu0 0.0
        %658 = vmatpush1.msra.mxu0 %v564
        %659 = vmatprep.subr.mxu0 0.0
        %660 = vmatpush1.msra.mxu0 %v565
        %661 = vmatprep.subr.mxu0 0.0
        %662 = vmatpush1.msra.mxu0 %v566
        %663 = vmatprep.mubr.f32.mxu0 %v408
        %664 = vmatmul.mubr.f32.gmra.mrb[0].mxu0 %v407
        %v665 = vpop.f32.mrb[0].mxu0
        %v666 = vadd.f32 0.0, %v665
        %v667 = vpop.f32.mrb[0].mxu0
        %668 = vmatprep.mubr.f32.mxu0 %v412
        %669 = vmatmul.mubr.f32.gmra.mrb[0].mxu0 %v411
        %v670 = vpop.f32.mrb[0].mxu0
        %v671 = vadd.f32 0.0, %v670
        %v672 = vpop.f32.mrb[0].mxu0
        %673 = vmatprep.mubr.f32.mxu0 %v416
        %674 = vmatmul.mubr.f32.gmra.mrb[0].mxu0 %v415
        %v675 = vpop.f32.mrb[0].mxu0
        %v676 = vadd.f32 0.0, %v675
        %v677 = vpop.f32.mrb[0].mxu0
        %678 = vmatprep.mubr.f32.mxu0 %v420
        %679 = vmatmul.mubr.f32.gmra.mrb[0].mxu0 %v419
        %v680 = vpop.f32.mrb[0].mxu0
        %v681 = vadd.f32 0.0, %v680
        %v682 = vpop.f32.mrb[0].mxu0
        %683 = vmatprep.mubr.f32.mxu0 %v424
        %684 = vmatmul.mubr.f32.gmra.mrb[0].mxu0 %v423
        %v685 = vpop.f32.mrb[0].mxu0
        %v686 = vadd.f32 0.0, %v685
        %v687 = vpop.f32.mrb[0].mxu0
        %688 = vmatprep.mubr.f32.mxu0 %v428
        %689 = vmatmul.mubr.f32.gmra.mrb[0].mxu0 %v427
        %v690 = vpop.f32.mrb[0].mxu0
        %v691 = vadd.f32 0.0, %v690
        %v692 = vpop.f32.mrb[0].mxu0
        %693 = vmatprep.mubr.f32.mxu0 %v432
        %694 = vmatmul.mubr.f32.gmra.mrb[0].mxu0 %v431
        %v695 = vpop.f32.mrb[0].mxu0
        %v696 = vadd.f32 0.0, %v695
        %v697 = vpop.f32.mrb[0].mxu0
        %698 = vmatprep.mubr.f32.mxu0 %v436
        %699 = vmatmul.mubr.f32.gmra.mrb[0].mxu0 %v435
        %v700 = vpop.f32.mrb[0].mxu0
        %v701 = vadd.f32 0.0, %v700
        %v702 = vpop.f32.mrb[0].mxu0
        %703 = vmatprep.mubr.f32.mxu0 %v440
        %704 = vmatmul.mubr.f32.gmra.mrb[0].mxu0 %v439
        %v705 = vpop.f32.mrb[0].mxu0
        %v706 = vadd.f32 0.0, %v705
        %v707 = vpop.f32.mrb[0].mxu0
        %708 = vmatprep.mubr.f32.mxu0 %v444
        %709 = vmatmul.mubr.f32.gmra.mrb[0].mxu0 %v443
        %v710 = vpop.f32.mrb[0].mxu0
        %v711 = vadd.f32 0.0, %v710
        %v712 = vpop.f32.mrb[0].mxu0
        %713 = vmatprep.mubr.f32.mxu0 %v448
        %714 = vmatmul.mubr.f32.gmra.mrb[0].mxu0 %v447
        %v715 = vpop.f32.mrb[0].mxu0
        %v716 = vadd.f32 0.0, %v715
        %v717 = vpop.f32.mrb[0].mxu0
        %718 = vmatprep.mubr.f32.mxu0 %v452
        %719 = vmatmul.mubr.f32.gmra.mrb[0].mxu0 %v451
        %v720 = vpop.f32.mrb[0].mxu0
        %v721 = vadd.f32 0.0, %v720
        %v722 = vpop.f32.mrb[0].mxu0
        %723 = vmatprep.mubr.f32.mxu0 %v456
        %724 = vmatmul.mubr.f32.gmra.mrb[0].mxu0 %v455
        %v725 = vpop.f32.mrb[0].mxu0
        %v726 = vadd.f32 0.0, %v725
        %v727 = vpop.f32.mrb[0].mxu0
        %728 = vmatprep.mubr.f32.mxu0 %v460
        %729 = vmatmul.mubr.f32.gmra.mrb[0].mxu0 %v459
        %v730 = vpop.f32.mrb[0].mxu0
        %v731 = vadd.f32 0.0, %v730
        %v732 = vpop.f32.mrb[0].mxu0
        %733 = vmatprep.mubr.f32.mxu0 %v464
        %734 = vmatmul.mubr.f32.gmra.mrb[0].mxu0 %v463
        %v735 = vpop.f32.mrb[0].mxu0
        %v736 = vadd.f32 0.0, %v735
        %v737 = vpop.f32.mrb[0].mxu0
        %738 = vmatprep.mubr.f32.mxu0 %v468
        %739 = vmatmul.mubr.f32.gmra.mrb[0].mxu0 %v467
        %v740 = vpop.f32.mrb[0].mxu0
        %v741 = vadd.f32 0.0, %v740
        %v742 = vpop.f32.mrb[0].mxu0
        %743 = vmatprep.mubr.f32.mxu0 %v472
        %744 = vmatmul.mubr.f32.gmra.mrb[0].mxu0 %v471
        %v745 = vpop.f32.mrb[0].mxu0
        %v746 = vadd.f32 0.0, %v745
        %v747 = vpop.f32.mrb[0].mxu0
        %748 = vmatprep.mubr.f32.mxu0 %v476
        %749 = vmatmul.mubr.f32.gmra.mrb[0].mxu0 %v475
        %v750 = vpop.f32.mrb[0].mxu0
        %v751 = vadd.f32 0.0, %v750
        %v752 = vpop.f32.mrb[0].mxu0
        %753 = vmatprep.mubr.f32.mxu0 %v480
        %754 = vmatmul.mubr.f32.gmra.mrb[0].mxu0 %v479
        %v755 = vpop.f32.mrb[0].mxu0
        %v756 = vadd.f32 0.0, %v755
        %v757 = vpop.f32.mrb[0].mxu0
        %758 = vmatprep.mubr.f32.mxu0 %v484
        %759 = vmatmul.mubr.f32.gmra.mrb[0].mxu0 %v483
        %v760 = vpop.f32.mrb[0].mxu0
        %v761 = vadd.f32 0.0, %v760
        %v762 = vpop.f32.mrb[0].mxu0
        %763 = vmatprep.mubr.f32.mxu0 %v488
        %764 = vmatmul.mubr.f32.gmra.mrb[0].mxu0 %v487
        %v765 = vpop.f32.mrb[0].mxu0
        %v766 = vadd.f32 0.0, %v765
        %v767 = vpop.f32.mrb[0].mxu0
        %768 = vmatprep.mubr.f32.mxu0 %v492
        %769 = vmatmul.mubr.f32.gmra.mrb[0].mxu0 %v491
        %v770 = vpop.f32.mrb[0].mxu0
        %v771 = vadd.f32 0.0, %v770
        %v772 = vpop.f32.mrb[0].mxu0
        %773 = vmatprep.mubr.f32.mxu0 %v496
        %774 = vmatmul.mubr.f32.gmra.mrb[0].mxu0 %v495
        %v775 = vpop.f32.mrb[0].mxu0
        %v776 = vadd.f32 0.0, %v775
        %v777 = vpop.f32.mrb[0].mxu0
        %778 = vmatprep.mubr.f32.mxu0 %v500
        %779 = vmatmul.mubr.f32.gmra.mrb[0].mxu0 %v499
        %v780 = vpop.f32.mrb[0].mxu0
        %v781 = vadd.f32 0.0, %v780
        %v782 = vpop.f32.mrb[0].mxu0
        %783 = vmatprep.mubr.f32.mxu0 %v504
        %784 = vmatmul.mubr.f32.gmra.mrb[0].mxu0 %v503
        %v785 = vpop.f32.mrb[0].mxu0
        %v786 = vadd.f32 0.0, %v785
        %v787 = vpop.f32.mrb[0].mxu0
        %788 = vmatprep.mubr.f32.mxu0 %v508
        %789 = vmatmul.mubr.f32.gmra.mrb[0].mxu0 %v507
        %v790 = vpop.f32.mrb[0].mxu0
        %v791 = vadd.f32 0.0, %v790
        %v792 = vpop.f32.mrb[0].mxu0
        %793 = vmatprep.mubr.f32.mxu0 %v512
        %794 = vmatmul.mubr.f32.gmra.mrb[0].mxu0 %v511
        %v795 = vpop.f32.mrb[0].mxu0
        %v796 = vadd.f32 0.0, %v795
        %v797 = vpop.f32.mrb[0].mxu0
        %798 = vmatprep.mubr.f32.mxu0 %v516
        %799 = vmatmul.mubr.f32.gmra.mrb[0].mxu0 %v515
        %v800 = vpop.f32.mrb[0].mxu0
        %v801 = vadd.f32 0.0, %v800
        %v802 = vpop.f32.mrb[0].mxu0
        %803 = vmatprep.mubr.f32.mxu0 %v520
        %804 = vmatmul.mubr.f32.gmra.mrb[0].mxu0 %v519
        %v805 = vpop.f32.mrb[0].mxu0
        %v806 = vadd.f32 0.0, %v805
        %v807 = vpop.f32.mrb[0].mxu0
        %808 = vmatprep.mubr.f32.mxu0 %v524
        %809 = vmatmul.mubr.f32.gmra.mrb[0].mxu0 %v523
        %v810 = vpop.f32.mrb[0].mxu0
        %v811 = vadd.f32 0.0, %v810
        %v812 = vpop.f32.mrb[0].mxu0
        %813 = vmatprep.mubr.f32.mxu0 %v528
        %814 = vmatmul.mubr.f32.gmra.mrb[0].mxu0 %v527
        %v815 = vpop.f32.mrb[0].mxu0
        %v816 = vadd.f32 0.0, %v815
        %v817 = vpop.f32.mrb[0].mxu0
        %818 = vmatprep.mubr.f32.mxu0 %v532
        %819 = vmatmul.mubr.f32.gmra.mrb[0].mxu0 %v531
        %v820 = vpop.f32.mrb[0].mxu0
        %v821 = vadd.f32 0.0, %v820
        %v822 = vpop.f32.mrb[0].mxu0
        %823 = vdwg.mxu0
        %824 = vmatprep.subr.mxu0 0.0
        %825 = vmatpush1.msra.mxu0 %v567
        %826 = vmatprep.subr.mxu0 0.0
        %827 = vmatpush1.msra.mxu0 %v568
        %828 = vmatprep.subr.mxu0 0.0
        %829 = vmatpush1.msra.mxu0 %v569
        %830 = vmatprep.subr.mxu0 0.0
        %831 = vmatpush1.msra.mxu0 %v570
        %832 = vmatprep.subr.mxu0 0.0
        %833 = vmatpush1.msra.mxu0 %v571
        %834 = vmatprep.subr.mxu0 0.0
        %835 = vmatpush1.msra.mxu0 %v572
        %836 = vmatprep.subr.mxu0 0.0
        %837 = vmatpush1.msra.mxu0 %v573
        %838 = vmatprep.subr.mxu0 0.0
        %839 = vmatpush1.msra.mxu0 %v574
        %840 = vmatprep.subr.mxu0 0.0
        %841 = vmatpush1.msra.mxu0 %v575
        %842 = vmatprep.subr.mxu0 0.0
        %843 = vmatpush1.msra.mxu0 %v576
        %844 = vmatprep.subr.mxu0 0.0
        %845 = vmatpush1.msra.mxu0 %v577
        %846 = vmatprep.subr.mxu0 0.0
        %847 = vmatpush1.msra.mxu0 %v578
        %848 = vmatprep.subr.mxu0 0.0
        %849 = vmatpush1.msra.mxu0 %v579
        %850 = vmatprep.subr.mxu0 0.0
        %851 = vmatpush1.msra.mxu0 %v580
        %852 = vmatprep.subr.mxu0 0.0
        %853 = vmatpush1.msra.mxu0 %v581
        %854 = vmatprep.subr.mxu0 0.0
        %855 = vmatpush1.msra.mxu0 %v582
        %856 = vmatprep.subr.mxu0 0.0
        %857 = vmatpush1.msra.mxu0 %v583
        %858 = vmatprep.subr.mxu0 0.0
        %859 = vmatpush1.msra.mxu0 %v584
        %860 = vmatprep.subr.mxu0 0.0
        %861 = vmatpush1.msra.mxu0 %v585
        %862 = vmatprep.subr.mxu0 0.0
        %863 = vmatpush1.msra.mxu0 %v586
        %864 = vmatprep.subr.mxu0 0.0
        %865 = vmatpush1.msra.mxu0 %v587
        %866 = vmatprep.subr.mxu0 0.0
        %867 = vmatpush1.msra.mxu0 %v588
        %868 = vmatprep.subr.mxu0 0.0
        %869 = vmatpush1.msra.mxu0 %v589
        %870 = vmatprep.subr.mxu0 0.0
        %871 = vmatpush1.msra.mxu0 %v590
        %872 = vmatprep.subr.mxu0 0.0
        %873 = vmatpush1.msra.mxu0 %v591
        %874 = vmatprep.subr.mxu0 0.0
        %875 = vmatpush1.msra.mxu0 %v592
        %876 = vmatprep.subr.mxu0 0.0
        %877 = vmatpush1.msra.mxu0 %v593
        %878 = vmatprep.subr.mxu0 0.0
        %879 = vmatpush1.msra.mxu0 %v594
        %880 = vmatprep.subr.mxu0 0.0
        %881 = vmatpush1.msra.mxu0 %v595
        %882 = vmatprep.subr.mxu0 0.0
        %883 = vmatpush1.msra.mxu0 %v596
        %884 = vmatprep.subr.mxu0 0.0
        %885 = vmatpush1.msra.mxu0 %v597
        %886 = vmatprep.subr.mxu0 0.0
        %887 = vmatpush1.msra.mxu0 %v598
        %888 = vmatprep.mubr.f32.mxu0 %v410
        %889 = vmatmul.mubr.f32.gmra.mrb[0].mxu0 %v409
        %v890 = vpop.f32.mrb[0].mxu0
        %v891 = vadd.f32 %v666, %v890
        %v892 = vpop.f32.mrb[0].mxu0
        %893 = vmatprep.mubr.f32.mxu0 %v414
        %894 = vmatmul.mubr.f32.gmra.mrb[0].mxu0 %v413
        %v895 = vpop.f32.mrb[0].mxu0
        %v896 = vadd.f32 %v671, %v895
        %v897 = vpop.f32.mrb[0].mxu0
        %898 = vmatprep.mubr.f32.mxu0 %v418
        %899 = vmatmul.mubr.f32.gmra.mrb[0].mxu0 %v417
        %v900 = vpop.f32.mrb[0].mxu0
        %v901 = vadd.f32 %v676, %v900
        %v902 = vpop.f32.mrb[0].mxu0
        %903 = vmatprep.mubr.f32.mxu0 %v422
        %904 = vmatmul.mubr.f32.gmra.mrb[0].mxu0 %v421
        %v905 = vpop.f32.mrb[0].mxu0
        %v906 = vadd.f32 %v681, %v905
        %v907 = vpop.f32.mrb[0].mxu0
        %908 = vmatprep.mubr.f32.mxu0 %v426
        %909 = vmatmul.mubr.f32.gmra.mrb[0].mxu0 %v425
        %v910 = vpop.f32.mrb[0].mxu0
        %v911 = vadd.f32 %v686, %v910
        %v912 = vpop.f32.mrb[0].mxu0
        %913 = vmatprep.mubr.f32.mxu0 %v430
        %914 = vmatmul.mubr.f32.gmra.mrb[0].mxu0 %v429
        %v915 = vpop.f32.mrb[0].mxu0
        %v916 = vadd.f32 %v691, %v915
        %v917 = vpop.f32.mrb[0].mxu0
        %918 = vmatprep.mubr.f32.mxu0 %v434
        %919 = vmatmul.mubr.f32.gmra.mrb[0].mxu0 %v433
        %v920 = vpop.f32.mrb[0].mxu0
        %v921 = vadd.f32 %v696, %v920
        %v922 = vpop.f32.mrb[0].mxu0
        %923 = vmatprep.mubr.f32.mxu0 %v438
        %924 = vmatmul.mubr.f32.gmra.mrb[0].mxu0 %v437
        %v925 = vpop.f32.mrb[0].mxu0
        %v926 = vadd.f32 %v701, %v925
        %v927 = vpop.f32.mrb[0].mxu0
        %928 = vmatprep.mubr.f32.mxu0 %v442
        %929 = vmatmul.mubr.f32.gmra.mrb[0].mxu0 %v441
        %v930 = vpop.f32.mrb[0].mxu0
        %v931 = vadd.f32 %v706, %v930
        %v932 = vpop.f32.mrb[0].mxu0
        %933 = vmatprep.mubr.f32.mxu0 %v446
        %934 = vmatmul.mubr.f32.gmra.mrb[0].mxu0 %v445
        %v935 = vpop.f32.mrb[0].mxu0
        %v936 = vadd.f32 %v711, %v935
        %v937 = vpop.f32.mrb[0].mxu0
        %938 = vmatprep.mubr.f32.mxu0 %v450
        %939 = vmatmul.mubr.f32.gmra.mrb[0].mxu0 %v449
        %v940 = vpop.f32.mrb[0].mxu0
        %v941 = vadd.f32 %v716, %v940
        %v942 = vpop.f32.mrb[0].mxu0
        %943 = vmatprep.mubr.f32.mxu0 %v454
        %944 = vmatmul.mubr.f32.gmra.mrb[0].mxu0 %v453
        %v945 = vpop.f32.mrb[0].mxu0
        %v946 = vadd.f32 %v721, %v945
        %v947 = vpop.f32.mrb[0].mxu0
        %948 = vmatprep.mubr.f32.mxu0 %v458
        %949 = vmatmul.mubr.f32.gmra.mrb[0].mxu0 %v457
        %v950 = vpop.f32.mrb[0].mxu0
        %v951 = vadd.f32 %v726, %v950
        %v952 = vpop.f32.mrb[0].mxu0
        %953 = vmatprep.mubr.f32.mxu0 %v462
        %954 = vmatmul.mubr.f32.gmra.mrb[0].mxu0 %v461
        %v955 = vpop.f32.mrb[0].mxu0
        %v956 = vadd.f32 %v731, %v955
        %v957 = vpop.f32.mrb[0].mxu0
        %958 = vmatprep.mubr.f32.mxu0 %v466
        %959 = vmatmul.mubr.f32.gmra.mrb[0].mxu0 %v465
        %v960 = vpop.f32.mrb[0].mxu0
        %v961 = vadd.f32 %v736, %v960
        %v962 = vpop.f32.mrb[0].mxu0
        %963 = vmatprep.mubr.f32.mxu0 %v470
        %964 = vmatmul.mubr.f32.gmra.mrb[0].mxu0 %v469
        %v965 = vpop.f32.mrb[0].mxu0
        %v966 = vadd.f32 %v741, %v965
        %v967 = vpop.f32.mrb[0].mxu0
        %968 = vmatprep.mubr.f32.mxu0 %v474
        %969 = vmatmul.mubr.f32.gmra.mrb[0].mxu0 %v473
        %v970 = vpop.f32.mrb[0].mxu0
        %v971 = vadd.f32 %v746, %v970
        %v972 = vpop.f32.mrb[0].mxu0
        %973 = vmatprep.mubr.f32.mxu0 %v478
        %974 = vmatmul.mubr.f32.gmra.mrb[0].mxu0 %v477
        %v975 = vpop.f32.mrb[0].mxu0
        %v976 = vadd.f32 %v751, %v975
        %v977 = vpop.f32.mrb[0].mxu0
        %978 = vmatprep.mubr.f32.mxu0 %v482
        %979 = vmatmul.mubr.f32.gmra.mrb[0].mxu0 %v481
        %v980 = vpop.f32.mrb[0].mxu0
        %v981 = vadd.f32 %v756, %v980
        %v982 = vpop.f32.mrb[0].mxu0
        %983 = vmatprep.mubr.f32.mxu0 %v486
        %984 = vmatmul.mubr.f32.gmra.mrb[0].mxu0 %v485
        %v985 = vpop.f32.mrb[0].mxu0
        %v986 = vadd.f32 %v761, %v985
        %v987 = vpop.f32.mrb[0].mxu0
        %988 = vmatprep.mubr.f32.mxu0 %v490
        %989 = vmatmul.mubr.f32.gmra.mrb[0].mxu0 %v489
        %v990 = vpop.f32.mrb[0].mxu0
        %v991 = vadd.f32 %v766, %v990
        %v992 = vpop.f32.mrb[0].mxu0
        %993 = vmatprep.mubr.f32.mxu0 %v494
        %994 = vmatmul.mubr.f32.gmra.mrb[0].mxu0 %v493
        %v995 = vpop.f32.mrb[0].mxu0
        %v996 = vadd.f32 %v771, %v995
        %v997 = vpop.f32.mrb[0].mxu0
        %998 = vmatprep.mubr.f32.mxu0 %v498
        %999 = vmatmul.mubr.f32.gmra.mrb[0].mxu0 %v497
        %v1000 = vpop.f32.mrb[0].mxu0
        %v1001 = vadd.f32 %v776, %v1000
        %v1002 = vpop.f32.mrb[0].mxu0
        %1003 = vmatprep.mubr.f32.mxu0 %v502
        %1004 = vmatmul.mubr.f32.gmra.mrb[0].mxu0 %v501
        %v1005 = vpop.f32.mrb[0].mxu0
        %v1006 = vadd.f32 %v781, %v1005
        %v1007 = vpop.f32.mrb[0].mxu0
        %1008 = vmatprep.mubr.f32.mxu0 %v506
        %1009 = vmatmul.mubr.f32.gmra.mrb[0].mxu0 %v505
        %v1010 = vpop.f32.mrb[0].mxu0
        %v1011 = vadd.f32 %v786, %v1010
        %v1012 = vpop.f32.mrb[0].mxu0
        %1013 = vmatprep.mubr.f32.mxu0 %v510
        %1014 = vmatmul.mubr.f32.gmra.mrb[0].mxu0 %v509
        %v1015 = vpop.f32.mrb[0].mxu0
        %v1016 = vadd.f32 %v791, %v1015
        %v1017 = vpop.f32.mrb[0].mxu0
        %1018 = vmatprep.mubr.f32.mxu0 %v514
        %1019 = vmatmul.mubr.f32.gmra.mrb[0].mxu0 %v513
        %v1020 = vpop.f32.mrb[0].mxu0
        %v1021 = vadd.f32 %v796, %v1020
        %v1022 = vpop.f32.mrb[0].mxu0
        %1023 = vmatprep.mubr.f32.mxu0 %v518
        %1024 = vmatmul.mubr.f32.gmra.mrb[0].mxu0 %v517
        %v1025 = vpop.f32.mrb[0].mxu0
        %v1026 = vadd.f32 %v801, %v1025
        %v1027 = vpop.f32.mrb[0].mxu0
        %1028 = vmatprep.mubr.f32.mxu0 %v522
        %1029 = vmatmul.mubr.f32.gmra.mrb[0].mxu0 %v521
        %v1030 = vpop.f32.mrb[0].mxu0
        %v1031 = vadd.f32 %v806, %v1030
        %v1032 = vpop.f32.mrb[0].mxu0
        %1033 = vmatprep.mubr.f32.mxu0 %v526
        %1034 = vmatmul.mubr.f32.gmra.mrb[0].mxu0 %v525
        %v1035 = vpop.f32.mrb[0].mxu0
        %v1036 = vadd.f32 %v811, %v1035
        %v1037 = vpop.f32.mrb[0].mxu0
        %1038 = vmatprep.mubr.f32.mxu0 %v530
        %1039 = vmatmul.mubr.f32.gmra.mrb[0].mxu0 %v529
        %v1040 = vpop.f32.mrb[0].mxu0
        %v1041 = vadd.f32 %v816, %v1040
        %v1042 = vpop.f32.mrb[0].mxu0
        %1043 = vmatprep.mubr.f32.mxu0 %v534
        %1044 = vmatmul.mubr.f32.gmra.mrb[0].mxu0 %v533
        %v1045 = vpop.f32.mrb[0].mxu0
        %v1046 = vadd.f32 %v821, %v1045
        %v1047 = vpop.f32.mrb[0].mxu0
        %1048 = vdwg.mxu0
        %v1049 = vadd.f32 %v311, %v891
        %v1050 = vadd.f32 %v312, %v896
        %v1051 = vadd.f32 %v313, %v901
        %v1052 = vadd.f32 %v314, %v906
        %v1053 = vadd.f32 %v315, %v911
        %v1054 = vadd.f32 %v316, %v916
        %v1055 = vadd.f32 %v317, %v921
        %v1056 = vadd.f32 %v318, %v926
        %v1057 = vadd.f32 %v319, %v931
        %v1058 = vadd.f32 %v320, %v936
        %v1059 = vadd.f32 %v321, %v941
        %v1060 = vadd.f32 %v322, %v946
        %v1061 = vadd.f32 %v323, %v951
        %v1062 = vadd.f32 %v324, %v956
        %v1063 = vadd.f32 %v325, %v961
        %v1064 = vadd.f32 %v326, %v966
        %v1065 = vadd.f32 %v327, %v971
        %v1066 = vadd.f32 %v328, %v976
        %v1067 = vadd.f32 %v329, %v981
        %v1068 = vadd.f32 %v330, %v986
        %v1069 = vadd.f32 %v331, %v991
        %v1070 = vadd.f32 %v332, %v996
        %v1071 = vadd.f32 %v333, %v1001
        %v1072 = vadd.f32 %v334, %v1006
        %v1073 = vadd.f32 %v335, %v1011
        %v1074 = vadd.f32 %v336, %v1016
        %v1075 = vadd.f32 %v337, %v1021
        %v1076 = vadd.f32 %v338, %v1026
        %v1077 = vadd.f32 %v339, %v1031
        %v1078 = vadd.f32 %v340, %v1036
        %v1079 = vadd.f32 %v341, %v1041
        %v1080 = vadd.f32 %v342, %v1046
        %vm1081 = vcmask 64512
        %1082 = vst.msk [vmem:[#allocation2] sm:$0xff] %vm1081, %v1049
        %1083 = vst.msk [vmem:[#allocation2 + $0x8] sm:$0xff] %vm1081, %v1050
        %1084 = vst.msk [vmem:[#allocation2 + $0x10] sm:$0xff] %vm1081, %v1051
        %1085 = vst.msk [vmem:[#allocation2 + $0x18] sm:$0xff] %vm1081, %v1052
        %1086 = vst.msk [vmem:[#allocation2 + $0x20] sm:$0xff] %vm1081, %v1053
        %1087 = vst.msk [vmem:[#allocation2 + $0x28] sm:$0xff] %vm1081, %v1054
        %1088 = vst.msk [vmem:[#allocation2 + $0x30] sm:$0xff] %vm1081, %v1055
        %1089 = vst.msk [vmem:[#allocation2 + $0x38] sm:$0xff] %vm1081, %v1056
        %1090 = vst.msk [vmem:[#allocation2 + $0x40] sm:$0xff] %vm1081, %v1057
        %1091 = vst.msk [vmem:[#allocation2 + $0x48] sm:$0xff] %vm1081, %v1058
        %1092 = vst.msk [vmem:[#allocation2 + $0x50] sm:$0xff] %vm1081, %v1059
        %1093 = vst.msk [vmem:[#allocation2 + $0x58] sm:$0xff] %vm1081, %v1060
        %1094 = vst.msk [vmem:[#allocation2 + $0x60] sm:$0xff] %vm1081, %v1061
        %1095 = vst.msk [vmem:[#allocation2 + $0x68] sm:$0xff] %vm1081, %v1062
        %1096 = vst.msk [vmem:[#allocation2 + $0x70] sm:$0xff] %vm1081, %v1063
        %1097 = vst.msk [vmem:[#allocation2 + $0x78] sm:$0xff] %vm1081, %v1064
        %1098 = vst.msk [vmem:[#allocation2 + $0x80] sm:$0xff] %vm1081, %v1065
        %1099 = vst.msk [vmem:[#allocation2 + $0x88] sm:$0xff] %vm1081, %v1066
        %1100 = vst.msk [vmem:[#allocation2 + $0x90] sm:$0xff] %vm1081, %v1067
        %1101 = vst.msk [vmem:[#allocation2 + $0x98] sm:$0xff] %vm1081, %v1068
        %1102 = vst.msk [vmem:[#allocation2 + $0xa0] sm:$0xff] %vm1081, %v1069
        %1103 = vst.msk [vmem:[#allocation2 + $0xa8] sm:$0xff] %vm1081, %v1070
        %1104 = vst.msk [vmem:[#allocation2 + $0xb0] sm:$0xff] %vm1081, %v1071
        %1105 = vst.msk [vmem:[#allocation2 + $0xb8] sm:$0xff] %vm1081, %v1072
        %1106 = vst.msk [vmem:[#allocation2 + $0xc0] sm:$0xff] %vm1081, %v1073
        %1107 = vst.msk [vmem:[#allocation2 + $0xc8] sm:$0xff] %vm1081, %v1074
        %1108 = vst.msk [vmem:[#allocation2 + $0xd0] sm:$0xff] %vm1081, %v1075
        %1109 = vst.msk [vmem:[#allocation2 + $0xd8] sm:$0xff] %vm1081, %v1076
        %1110 = vst.msk [vmem:[#allocation2 + $0xe0] sm:$0xff] %vm1081, %v1077
        %1111 = vst.msk [vmem:[#allocation2 + $0xe8] sm:$0xff] %vm1081, %v1078
        %1112 = vst.msk [vmem:[#allocation2 + $0xf0] sm:$0xff] %vm1081, %v1079
        %1113 = vst.msk [vmem:[#allocation2 + $0xf8] sm:$0xff] %vm1081, %v1080
        // Predicated region
        $region41: #{tpu_custom_call.1} parent=35 // pred_check
          %p1114 = pneg %p274
        $region42: #{tpu_custom_call.1} parent=35 // pred_check_branch
          %1116 = sbr.rel (%p1114) target = $region44
        $region43: #{tpu_custom_call.1} parent=35 // pred_region
          %v1117 = vld [vmem:[#allocation2] sm:$0xff]
          %v1118 = vld [vmem:[#allocation2 + $0x8] sm:$0xff]
          %v1119 = vld [vmem:[#allocation2 + $0x10] sm:$0xff]
          %v1120 = vld [vmem:[#allocation2 + $0x18] sm:$0xff]
          %v1121 = vld [vmem:[#allocation2 + $0x20] sm:$0xff]
          %v1122 = vld [vmem:[#allocation2 + $0x28] sm:$0xff]
          %v1123 = vld [vmem:[#allocation2 + $0x30] sm:$0xff]
          %v1124 = vld [vmem:[#allocation2 + $0x38] sm:$0xff]
          %v1125 = vld [vmem:[#allocation2 + $0x40] sm:$0xff]
          %v1126 = vld [vmem:[#allocation2 + $0x48] sm:$0xff]
          %v1127 = vld [vmem:[#allocation2 + $0x50] sm:$0xff]
          %v1128 = vld [vmem:[#allocation2 + $0x58] sm:$0xff]
          %v1129 = vld [vmem:[#allocation2 + $0x60] sm:$0xff]
          %v1130 = vld [vmem:[#allocation2 + $0x68] sm:$0xff]
          %v1131 = vld [vmem:[#allocation2 + $0x70] sm:$0xff]
          %v1132 = vld [vmem:[#allocation2 + $0x78] sm:$0xff]
          %v1133 = vld [vmem:[#allocation2 + $0x80] sm:$0xff]
          %v1134 = vld [vmem:[#allocation2 + $0x88] sm:$0xff]
          %v1135 = vld [vmem:[#allocation2 + $0x90] sm:$0xff]
          %v1136 = vld [vmem:[#allocation2 + $0x98] sm:$0xff]
          %v1137 = vld [vmem:[#allocation2 + $0xa0] sm:$0xff]
          %v1138 = vld [vmem:[#allocation2 + $0xa8] sm:$0xff]
          %v1139 = vld [vmem:[#allocation2 + $0xb0] sm:$0xff]
          %v1140 = vld [vmem:[#allocation2 + $0xb8] sm:$0xff]
          %v1141 = vld [vmem:[#allocation2 + $0xc0] sm:$0xff]
          %v1142 = vld [vmem:[#allocation2 + $0xc8] sm:$0xff]
          %v1143 = vld [vmem:[#allocation2 + $0xd0] sm:$0xff]
          %v1144 = vld [vmem:[#allocation2 + $0xd8] sm:$0xff]
          %v1145 = vld [vmem:[#allocation2 + $0xe0] sm:$0xff]
          %v1146 = vld [vmem:[#allocation2 + $0xe8] sm:$0xff]
          %v1147 = vld [vmem:[#allocation2 + $0xf0] sm:$0xff]
          %v1148 = vld [vmem:[#allocation2 + $0xf8] sm:$0xff]
          %v1149 = vld [vmem:[%s271] sm:$0xff]
          %v1150 = vld [vmem:[%s271 + $0x8] sm:$0xff]
          %v1151 = vld [vmem:[%s271 + $0x10] sm:$0xff]
          %v1152 = vld [vmem:[%s271 + $0x18] sm:$0xff]
          %v1153 = vld [vmem:[%s271 + $0x20] sm:$0xff]
          %v1154 = vld [vmem:[%s271 + $0x28] sm:$0xff]
          %v1155 = vld [vmem:[%s271 + $0x30] sm:$0xff]
          %v1156 = vld [vmem:[%s271 + $0x38] sm:$0xff]
          %v1157 = vld [vmem:[%s271 + $0x40] sm:$0xff]
          %v1158 = vld [vmem:[%s271 + $0x48] sm:$0xff]
          %v1159 = vld [vmem:[%s271 + $0x50] sm:$0xff]
          %v1160 = vld [vmem:[%s271 + $0x58] sm:$0xff]
          %v1161 = vld [vmem:[%s271 + $0x60] sm:$0xff]
          %v1162 = vld [vmem:[%s271 + $0x68] sm:$0xff]
          %v1163 = vld [vmem:[%s271 + $0x70] sm:$0xff]
          %v1164 = vld [vmem:[%s271 + $0x78] sm:$0xff]
          %v1165 = vld [vmem:[%s271 + $0x80] sm:$0xff]
          %v1166 = vld [vmem:[%s271 + $0x88] sm:$0xff]
          %v1167 = vld [vmem:[%s271 + $0x90] sm:$0xff]
          %v1168 = vld [vmem:[%s271 + $0x98] sm:$0xff]
          %v1169 = vld [vmem:[%s271 + $0xa0] sm:$0xff]
          %v1170 = vld [vmem:[%s271 + $0xa8] sm:$0xff]
          %v1171 = vld [vmem:[%s271 + $0xb0] sm:$0xff]
          %v1172 = vld [vmem:[%s271 + $0xb8] sm:$0xff]
          %v1173 = vld [vmem:[%s271 + $0xc0] sm:$0xff]
          %v1174 = vld [vmem:[%s271 + $0xc8] sm:$0xff]
          %v1175 = vld [vmem:[%s271 + $0xd0] sm:$0xff]
          %v1176 = vld [vmem:[%s271 + $0xd8] sm:$0xff]
          %v1177 = vld [vmem:[%s271 + $0xe0] sm:$0xff]
          %v1178 = vld [vmem:[%s271 + $0xe8] sm:$0xff]
          %v1179 = vld [vmem:[%s271 + $0xf0] sm:$0xff]
          %v1180 = vld [vmem:[%s271 + $0xf8] sm:$0xff]
          %1182 = vset.pattern.permute.xlu0 0
          %1183 = vperm.xlu0 %1182, %v1149
          %v1184 = vpop.permute.xlu0 %1183
          %1187 = vset.pattern.permute.xlu0 0
          %1188 = vperm.xlu0 %1187, %v1150
          %v1189 = vpop.permute.xlu0 %1188
          %1192 = vset.pattern.permute.xlu0 0
          %1193 = vperm.xlu0 %1192, %v1151
          %v1194 = vpop.permute.xlu0 %1193
          %1197 = vset.pattern.permute.xlu0 0
          %1198 = vperm.xlu0 %1197, %v1152
          %v1199 = vpop.permute.xlu0 %1198
          %1202 = vset.pattern.permute.xlu0 0
          %1203 = vperm.xlu0 %1202, %v1153
          %v1204 = vpop.permute.xlu0 %1203
          %1207 = vset.pattern.permute.xlu0 0
          %1208 = vperm.xlu0 %1207, %v1154
          %v1209 = vpop.permute.xlu0 %1208
          %1212 = vset.pattern.permute.xlu0 0
          %1213 = vperm.xlu0 %1212, %v1155
          %v1214 = vpop.permute.xlu0 %1213
          %1217 = vset.pattern.permute.xlu0 0
          %1218 = vperm.xlu0 %1217, %v1156
          %v1219 = vpop.permute.xlu0 %1218
          %1222 = vset.pattern.permute.xlu0 0
          %1223 = vperm.xlu0 %1222, %v1157
          %v1224 = vpop.permute.xlu0 %1223
          %1227 = vset.pattern.permute.xlu0 0
          %1228 = vperm.xlu0 %1227, %v1158
          %v1229 = vpop.permute.xlu0 %1228
          %1232 = vset.pattern.permute.xlu0 0
          %1233 = vperm.xlu0 %1232, %v1159
          %v1234 = vpop.permute.xlu0 %1233
          %1237 = vset.pattern.permute.xlu0 0
          %1238 = vperm.xlu0 %1237, %v1160
          %v1239 = vpop.permute.xlu0 %1238
          %1242 = vset.pattern.permute.xlu0 0
          %1243 = vperm.xlu0 %1242, %v1161
          %v1244 = vpop.permute.xlu0 %1243
          %1247 = vset.pattern.permute.xlu0 0
          %1248 = vperm.xlu0 %1247, %v1162
          %v1249 = vpop.permute.xlu0 %1248
          %1252 = vset.pattern.permute.xlu0 0
          %1253 = vperm.xlu0 %1252, %v1163
          %v1254 = vpop.permute.xlu0 %1253
          %1257 = vset.pattern.permute.xlu0 0
          %1258 = vperm.xlu0 %1257, %v1164
          %v1259 = vpop.permute.xlu0 %1258
          %1262 = vset.pattern.permute.xlu0 0
          %1263 = vperm.xlu0 %1262, %v1165
          %v1264 = vpop.permute.xlu0 %1263
          %1267 = vset.pattern.permute.xlu0 0
          %1268 = vperm.xlu0 %1267, %v1166
          %v1269 = vpop.permute.xlu0 %1268
          %1272 = vset.pattern.permute.xlu0 0
          %1273 = vperm.xlu0 %1272, %v1167
          %v1274 = vpop.permute.xlu0 %1273
          %1277 = vset.pattern.permute.xlu0 0
          %1278 = vperm.xlu0 %1277, %v1168
          %v1279 = vpop.permute.xlu0 %1278
          %1282 = vset.pattern.permute.xlu0 0
          %1283 = vperm.xlu0 %1282, %v1169
          %v1284 = vpop.permute.xlu0 %1283
          %1287 = vset.pattern.permute.xlu0 0
          %1288 = vperm.xlu0 %1287, %v1170
          %v1289 = vpop.permute.xlu0 %1288
          %1292 = vset.pattern.permute.xlu0 0
          %1293 = vperm.xlu0 %1292, %v1171
          %v1294 = vpop.permute.xlu0 %1293
          %1297 = vset.pattern.permute.xlu0 0
          %1298 = vperm.xlu0 %1297, %v1172
          %v1299 = vpop.permute.xlu0 %1298
          %1302 = vset.pattern.permute.xlu0 0
          %1303 = vperm.xlu0 %1302, %v1173
          %v1304 = vpop.permute.xlu0 %1303
          %1307 = vset.pattern.permute.xlu0 0
          %1308 = vperm.xlu0 %1307, %v1174
          %v1309 = vpop.permute.xlu0 %1308
          %1312 = vset.pattern.permute.xlu0 0
          %1313 = vperm.xlu0 %1312, %v1175
          %v1314 = vpop.permute.xlu0 %1313
          %1317 = vset.pattern.permute.xlu0 0
          %1318 = vperm.xlu0 %1317, %v1176
          %v1319 = vpop.permute.xlu0 %1318
          %1322 = vset.pattern.permute.xlu0 0
          %1323 = vperm.xlu0 %1322, %v1177
          %v1324 = vpop.permute.xlu0 %1323
          %1327 = vset.pattern.permute.xlu0 0
          %1328 = vperm.xlu0 %1327, %v1178
          %v1329 = vpop.permute.xlu0 %1328
          %1332 = vset.pattern.permute.xlu0 0
          %1333 = vperm.xlu0 %1332, %v1179
          %v1334 = vpop.permute.xlu0 %1333
          %1337 = vset.pattern.permute.xlu0 0
          %1338 = vperm.xlu0 %1337, %v1180
          %v1339 = vpop.permute.xlu0 %1338
          %v1341 = vmul.f32 %v1117, %v1184
          %v1342 = vmul.f32 %v1118, %v1189
          %v1343 = vmul.f32 %v1119, %v1194
          %v1344 = vmul.f32 %v1120, %v1199
          %v1345 = vmul.f32 %v1121, %v1204
          %v1346 = vmul.f32 %v1122, %v1209
          %v1347 = vmul.f32 %v1123, %v1214
          %v1348 = vmul.f32 %v1124, %v1219
          %v1349 = vmul.f32 %v1125, %v1224
          %v1350 = vmul.f32 %v1126, %v1229
          %v1351 = vmul.f32 %v1127, %v1234
          %v1352 = vmul.f32 %v1128, %v1239
          %v1353 = vmul.f32 %v1129, %v1244
          %v1354 = vmul.f32 %v1130, %v1249
          %v1355 = vmul.f32 %v1131, %v1254
          %v1356 = vmul.f32 %v1132, %v1259
          %v1357 = vmul.f32 %v1133, %v1264
          %v1358 = vmul.f32 %v1134, %v1269
          %v1359 = vmul.f32 %v1135, %v1274
          %v1360 = vmul.f32 %v1136, %v1279
          %v1361 = vmul.f32 %v1137, %v1284
          %v1362 = vmul.f32 %v1138, %v1289
          %v1363 = vmul.f32 %v1139, %v1294
          %v1364 = vmul.f32 %v1140, %v1299
          %v1365 = vmul.f32 %v1141, %v1304
          %v1366 = vmul.f32 %v1142, %v1309
          %v1367 = vmul.f32 %v1143, %v1314
          %v1368 = vmul.f32 %v1144, %v1319
          %v1369 = vmul.f32 %v1145, %v1324
          %v1370 = vmul.f32 %v1146, %v1329
          %v1371 = vmul.f32 %v1147, %v1334
          %v1372 = vmul.f32 %v1148, %v1339
          %v1373 = vld [vmem:[%s2] sm:$0xff]
          %v1375 = vsel %vm1081, %v1341, 0
          %v1378 = vsel %vm1081, %v1342, 0
          %v1381 = vsel %vm1081, %v1343, 0
          %v1384 = vsel %vm1081, %v1344, 0
          %v1387 = vsel %vm1081, %v1345, 0
          %v1390 = vsel %vm1081, %v1346, 0
          %v1393 = vsel %vm1081, %v1347, 0
          %v1396 = vsel %vm1081, %v1348, 0
          %v1399 = vsel %vm1081, %v1349, 0
          %v1402 = vsel %vm1081, %v1350, 0
          %v1405 = vsel %vm1081, %v1351, 0
          %v1408 = vsel %vm1081, %v1352, 0
          %v1411 = vsel %vm1081, %v1353, 0
          %v1414 = vsel %vm1081, %v1354, 0
          %v1417 = vsel %vm1081, %v1355, 0
          %v1420 = vsel %vm1081, %v1356, 0
          %v1423 = vsel %vm1081, %v1357, 0
          %v1426 = vsel %vm1081, %v1358, 0
          %v1429 = vsel %vm1081, %v1359, 0
          %v1432 = vsel %vm1081, %v1360, 0
          %v1435 = vsel %vm1081, %v1361, 0
          %v1438 = vsel %vm1081, %v1362, 0
          %v1441 = vsel %vm1081, %v1363, 0
          %v1444 = vsel %vm1081, %v1364, 0
          %v1447 = vsel %vm1081, %v1365, 0
          %v1450 = vsel %vm1081, %v1366, 0
          %v1453 = vsel %vm1081, %v1367, 0
          %v1456 = vsel %vm1081, %v1368, 0
          %v1459 = vsel %vm1081, %v1369, 0
          %v1462 = vsel %vm1081, %v1370, 0
          %v1465 = vsel %vm1081, %v1371, 0
          %v1468 = vsel %vm1081, %v1372, 0
          %1470 = vmatprep.subr.mxu0 0.0
          %1471 = vmatpush1.msra.mxu0 %v1373
          %1472 = vmatprep.subr.mxu0 0.0
          %1473 = vmatpush1.msra.mxu0 0.0
          %1474 = vmatprep.subr.mxu0 0.0
          %1475 = vmatpush1.msra.mxu0 0.0
          %1476 = vmatprep.subr.mxu0 0.0
          %1477 = vmatpush1.msra.mxu0 0.0
          %1478 = vmatprep.subr.mxu0 0.0
          %1479 = vmatpush1.msra.mxu0 0.0
          %1480 = vmatprep.subr.mxu0 0.0
          %1481 = vmatpush1.msra.mxu0 0.0
          %1482 = vmatprep.subr.mxu0 0.0
          %1483 = vmatpush1.msra.mxu0 0.0
          %1484 = vmatprep.subr.mxu0 0.0
          %1485 = vmatpush1.msra.mxu0 0.0
          %1486 = vmatprep.subr.mxu0 0.0
          %1487 = vmatpush1.msra.mxu0 0.0
          %1488 = vmatprep.subr.mxu0 0.0
          %1489 = vmatpush1.msra.mxu0 0.0
          %1490 = vmatprep.subr.mxu0 0.0
          %1491 = vmatpush1.msra.mxu0 0.0
          %1492 = vmatprep.subr.mxu0 0.0
          %1493 = vmatpush1.msra.mxu0 0.0
          %1494 = vmatprep.subr.mxu0 0.0
          %1495 = vmatpush1.msra.mxu0 0.0
          %1496 = vmatprep.subr.mxu0 0.0
          %1497 = vmatpush1.msra.mxu0 0.0
          %1498 = vmatprep.subr.mxu0 0.0
          %1499 = vmatpush1.msra.mxu0 0.0
          %1500 = vmatprep.subr.mxu0 0.0
          %1501 = vmatpush1.msra.mxu0 0.0
          %1502 = vmatprep.subr.mxu0 0.0
          %1503 = vmatpush1.msra.mxu0 0.0
          %1504 = vmatprep.subr.mxu0 0.0
          %1505 = vmatpush1.msra.mxu0 0.0
          %1506 = vmatprep.subr.mxu0 0.0
          %1507 = vmatpush1.msra.mxu0 0.0
          %1508 = vmatprep.subr.mxu0 0.0
          %1509 = vmatpush1.msra.mxu0 0.0
          %1510 = vmatprep.subr.mxu0 0.0
          %1511 = vmatpush1.msra.mxu0 0.0
          %1512 = vmatprep.subr.mxu0 0.0
          %1513 = vmatpush1.msra.mxu0 0.0
          %1514 = vmatprep.subr.mxu0 0.0
          %1515 = vmatpush1.msra.mxu0 0.0
          %1516 = vmatprep.subr.mxu0 0.0
          %1517 = vmatpush1.msra.mxu0 0.0
          %1518 = vmatprep.subr.mxu0 0.0
          %1519 = vmatpush1.msra.mxu0 0.0
          %1520 = vmatprep.subr.mxu0 0.0
          %1521 = vmatpush1.msra.mxu0 0.0
          %1522 = vmatprep.subr.mxu0 0.0
          %1523 = vmatpush1.msra.mxu0 0.0
          %1524 = vmatprep.subr.mxu0 0.0
          %1525 = vmatpush1.msra.mxu0 0.0
          %1526 = vmatprep.subr.mxu0 0.0
          %1527 = vmatpush1.msra.mxu0 0.0
          %1528 = vmatprep.subr.mxu0 0.0
          %1529 = vmatpush1.msra.mxu0 0.0
          %1530 = vmatprep.subr.mxu0 0.0
          %1531 = vmatpush1.msra.mxu0 0.0
          %1532 = vmatprep.subr.mxu0 0.0
          %1533 = vmatpush1.msra.mxu0 0.0
          %1534 = vmatprep.mubr.f32.mxu0 0.0
          %1535 = vmatmul.mubr.f32.gmra.mrb[0].mxu0 %v1375
          %v1536 = vpop.f32.mrb[0].mxu0
          %v1537 = vadd.f32 0.0, %v1536
          %v1538 = vpop.f32.mrb[0].mxu0
          %1539 = vmatprep.mubr.f32.mxu0 0.0
          %1540 = vmatmul.mubr.f32.gmra.mrb[0].mxu0 %v1378
          %v1541 = vpop.f32.mrb[0].mxu0
          %v1542 = vadd.f32 0.0, %v1541
          %v1543 = vpop.f32.mrb[0].mxu0
          %1544 = vmatprep.mubr.f32.mxu0 0.0
          %1545 = vmatmul.mubr.f32.gmra.mrb[0].mxu0 %v1381
          %v1546 = vpop.f32.mrb[0].mxu0
          %v1547 = vadd.f32 0.0, %v1546
          %v1548 = vpop.f32.mrb[0].mxu0
          %1549 = vmatprep.mubr.f32.mxu0 0.0
          %1550 = vmatmul.mubr.f32.gmra.mrb[0].mxu0 %v1384
          %v1551 = vpop.f32.mrb[0].mxu0
          %v1552 = vadd.f32 0.0, %v1551
          %v1553 = vpop.f32.mrb[0].mxu0
          %1554 = vmatprep.mubr.f32.mxu0 0.0
          %1555 = vmatmul.mubr.f32.gmra.mrb[0].mxu0 %v1387
          %v1556 = vpop.f32.mrb[0].mxu0
          %v1557 = vadd.f32 0.0, %v1556
          %v1558 = vpop.f32.mrb[0].mxu0
          %1559 = vmatprep.mubr.f32.mxu0 0.0
          %1560 = vmatmul.mubr.f32.gmra.mrb[0].mxu0 %v1390
          %v1561 = vpop.f32.mrb[0].mxu0
          %v1562 = vadd.f32 0.0, %v1561
          %v1563 = vpop.f32.mrb[0].mxu0
          %1564 = vmatprep.mubr.f32.mxu0 0.0
          %1565 = vmatmul.mubr.f32.gmra.mrb[0].mxu0 %v1393
          %v1566 = vpop.f32.mrb[0].mxu0
          %v1567 = vadd.f32 0.0, %v1566
          %v1568 = vpop.f32.mrb[0].mxu0
          %1569 = vmatprep.mubr.f32.mxu0 0.0
          %1570 = vmatmul.mubr.f32.gmra.mrb[0].mxu0 %v1396
          %v1571 = vpop.f32.mrb[0].mxu0
          %v1572 = vadd.f32 0.0, %v1571
          %v1573 = vpop.f32.mrb[0].mxu0
          %1574 = vmatprep.mubr.f32.mxu0 0.0
          %1575 = vmatmul.mubr.f32.gmra.mrb[0].mxu0 %v1399
          %v1576 = vpop.f32.mrb[0].mxu0
          %v1577 = vadd.f32 0.0, %v1576
          %v1578 = vpop.f32.mrb[0].mxu0
          %1579 = vmatprep.mubr.f32.mxu0 0.0
          %1580 = vmatmul.mubr.f32.gmra.mrb[0].mxu0 %v1402
          %v1581 = vpop.f32.mrb[0].mxu0
          %v1582 = vadd.f32 0.0, %v1581
          %v1583 = vpop.f32.mrb[0].mxu0
          %1584 = vmatprep.mubr.f32.mxu0 0.0
          %1585 = vmatmul.mubr.f32.gmra.mrb[0].mxu0 %v1405
          %v1586 = vpop.f32.mrb[0].mxu0
          %v1587 = vadd.f32 0.0, %v1586
          %v1588 = vpop.f32.mrb[0].mxu0
          %1589 = vmatprep.mubr.f32.mxu0 0.0
          %1590 = vmatmul.mubr.f32.gmra.mrb[0].mxu0 %v1408
          %v1591 = vpop.f32.mrb[0].mxu0
          %v1592 = vadd.f32 0.0, %v1591
          %v1593 = vpop.f32.mrb[0].mxu0
          %1594 = vmatprep.mubr.f32.mxu0 0.0
          %1595 = vmatmul.mubr.f32.gmra.mrb[0].mxu0 %v1411
          %v1596 = vpop.f32.mrb[0].mxu0
          %v1597 = vadd.f32 0.0, %v1596
          %v1598 = vpop.f32.mrb[0].mxu0
          %1599 = vmatprep.mubr.f32.mxu0 0.0
          %1600 = vmatmul.mubr.f32.gmra.mrb[0].mxu0 %v1414
          %v1601 = vpop.f32.mrb[0].mxu0
          %v1602 = vadd.f32 0.0, %v1601
          %v1603 = vpop.f32.mrb[0].mxu0
          %1604 = vmatprep.mubr.f32.mxu0 0.0
          %1605 = vmatmul.mubr.f32.gmra.mrb[0].mxu0 %v1417
          %v1606 = vpop.f32.mrb[0].mxu0
          %v1607 = vadd.f32 0.0, %v1606
          %v1608 = vpop.f32.mrb[0].mxu0
          %1609 = vmatprep.mubr.f32.mxu0 0.0
          %1610 = vmatmul.mubr.f32.gmra.mrb[0].mxu0 %v1420
          %v1611 = vpop.f32.mrb[0].mxu0
          %v1612 = vadd.f32 0.0, %v1611
          %v1613 = vpop.f32.mrb[0].mxu0
          %1614 = vmatprep.mubr.f32.mxu0 0.0
          %1615 = vmatmul.mubr.f32.gmra.mrb[0].mxu0 %v1423
          %v1616 = vpop.f32.mrb[0].mxu0
          %v1617 = vadd.f32 0.0, %v1616
          %v1618 = vpop.f32.mrb[0].mxu0
          %1619 = vmatprep.mubr.f32.mxu0 0.0
          %1620 = vmatmul.mubr.f32.gmra.mrb[0].mxu0 %v1426
          %v1621 = vpop.f32.mrb[0].mxu0
          %v1622 = vadd.f32 0.0, %v1621
          %v1623 = vpop.f32.mrb[0].mxu0
          %1624 = vmatprep.mubr.f32.mxu0 0.0
          %1625 = vmatmul.mubr.f32.gmra.mrb[0].mxu0 %v1429
          %v1626 = vpop.f32.mrb[0].mxu0
          %v1627 = vadd.f32 0.0, %v1626
          %v1628 = vpop.f32.mrb[0].mxu0
          %1629 = vmatprep.mubr.f32.mxu0 0.0
          %1630 = vmatmul.mubr.f32.gmra.mrb[0].mxu0 %v1432
          %v1631 = vpop.f32.mrb[0].mxu0
          %v1632 = vadd.f32 0.0, %v1631
          %v1633 = vpop.f32.mrb[0].mxu0
          %1634 = vmatprep.mubr.f32.mxu0 0.0
          %1635 = vmatmul.mubr.f32.gmra.mrb[0].mxu0 %v1435
          %v1636 = vpop.f32.mrb[0].mxu0
          %v1637 = vadd.f32 0.0, %v1636
          %v1638 = vpop.f32.mrb[0].mxu0
          %1639 = vmatprep.mubr.f32.mxu0 0.0
          %1640 = vmatmul.mubr.f32.gmra.mrb[0].mxu0 %v1438
          %v1641 = vpop.f32.mrb[0].mxu0
          %v1642 = vadd.f32 0.0, %v1641
          %v1643 = vpop.f32.mrb[0].mxu0
          %1644 = vmatprep.mubr.f32.mxu0 0.0
          %1645 = vmatmul.mubr.f32.gmra.mrb[0].mxu0 %v1441
          %v1646 = vpop.f32.mrb[0].mxu0
          %v1647 = vadd.f32 0.0, %v1646
          %v1648 = vpop.f32.mrb[0].mxu0
          %1649 = vmatprep.mubr.f32.mxu0 0.0
          %1650 = vmatmul.mubr.f32.gmra.mrb[0].mxu0 %v1444
          %v1651 = vpop.f32.mrb[0].mxu0
          %v1652 = vadd.f32 0.0, %v1651
          %v1653 = vpop.f32.mrb[0].mxu0
          %1654 = vmatprep.mubr.f32.mxu0 0.0
          %1655 = vmatmul.mubr.f32.gmra.mrb[0].mxu0 %v1447
          %v1656 = vpop.f32.mrb[0].mxu0
          %v1657 = vadd.f32 0.0, %v1656
          %v1658 = vpop.f32.mrb[0].mxu0
          %1659 = vmatprep.mubr.f32.mxu0 0.0
          %1660 = vmatmul.mubr.f32.gmra.mrb[0].mxu0 %v1450
          %v1661 = vpop.f32.mrb[0].mxu0
          %v1662 = vadd.f32 0.0, %v1661
          %v1663 = vpop.f32.mrb[0].mxu0
          %1664 = vmatprep.mubr.f32.mxu0 0.0
          %1665 = vmatmul.mubr.f32.gmra.mrb[0].mxu0 %v1453
          %v1666 = vpop.f32.mrb[0].mxu0
          %v1667 = vadd.f32 0.0, %v1666
          %v1668 = vpop.f32.mrb[0].mxu0
          %1669 = vmatprep.mubr.f32.mxu0 0.0
          %1670 = vmatmul.mubr.f32.gmra.mrb[0].mxu0 %v1456
          %v1671 = vpop.f32.mrb[0].mxu0
          %v1672 = vadd.f32 0.0, %v1671
          %v1673 = vpop.f32.mrb[0].mxu0
          %1674 = vmatprep.mubr.f32.mxu0 0.0
          %1675 = vmatmul.mubr.f32.gmra.mrb[0].mxu0 %v1459
          %v1676 = vpop.f32.mrb[0].mxu0
          %v1677 = vadd.f32 0.0, %v1676
          %v1678 = vpop.f32.mrb[0].mxu0
          %1679 = vmatprep.mubr.f32.mxu0 0.0
          %1680 = vmatmul.mubr.f32.gmra.mrb[0].mxu0 %v1462
          %v1681 = vpop.f32.mrb[0].mxu0
          %v1682 = vadd.f32 0.0, %v1681
          %v1683 = vpop.f32.mrb[0].mxu0
          %1684 = vmatprep.mubr.f32.mxu0 0.0
          %1685 = vmatmul.mubr.f32.gmra.mrb[0].mxu0 %v1465
          %v1686 = vpop.f32.mrb[0].mxu0
          %v1687 = vadd.f32 0.0, %v1686
          %v1688 = vpop.f32.mrb[0].mxu0
          %1689 = vmatprep.mubr.f32.mxu0 0.0
          %1690 = vmatmul.mubr.f32.gmra.mrb[0].mxu0 %v1468
          %v1691 = vpop.f32.mrb[0].mxu0
          %v1692 = vadd.f32 0.0, %v1691
          %v1693 = vpop.f32.mrb[0].mxu0
          %1694 = vdwg.mxu0
          %v1695 = vmul.f32 %v1537, %v1537
          %v1696 = vmul.f32 %v1542, %v1542
          %v1697 = vmul.f32 %v1547, %v1547
          %v1698 = vmul.f32 %v1552, %v1552
          %v1699 = vmul.f32 %v1557, %v1557
          %v1700 = vmul.f32 %v1562, %v1562
          %v1701 = vmul.f32 %v1567, %v1567
          %v1702 = vmul.f32 %v1572, %v1572
          %v1703 = vmul.f32 %v1577, %v1577
          %v1704 = vmul.f32 %v1582, %v1582
          %v1705 = vmul.f32 %v1587, %v1587
          %v1706 = vmul.f32 %v1592, %v1592
          %v1707 = vmul.f32 %v1597, %v1597
          %v1708 = vmul.f32 %v1602, %v1602
          %v1709 = vmul.f32 %v1607, %v1607
          %v1710 = vmul.f32 %v1612, %v1612
          %v1711 = vmul.f32 %v1617, %v1617
          %v1712 = vmul.f32 %v1622, %v1622
          %v1713 = vmul.f32 %v1627, %v1627
          %v1714 = vmul.f32 %v1632, %v1632
          %v1715 = vmul.f32 %v1637, %v1637
          %v1716 = vmul.f32 %v1642, %v1642
          %v1717 = vmul.f32 %v1647, %v1647
          %v1718 = vmul.f32 %v1652, %v1652
          %v1719 = vmul.f32 %v1657, %v1657
          %v1720 = vmul.f32 %v1662, %v1662
          %v1721 = vmul.f32 %v1667, %v1667
          %v1722 = vmul.f32 %v1672, %v1672
          %v1723 = vmul.f32 %v1677, %v1677
          %v1724 = vmul.f32 %v1682, %v1682
          %v1725 = vmul.f32 %v1687, %v1687
          %v1726 = vmul.f32 %v1692, %v1692
          %1727 = vadd.xlane.f32.xlu0 %v1695
          %v1728 = vpop.xlane.xlu0 %1727
          %1729 = vadd.xlane.f32.xlu0 %v1696
          %v1730 = vpop.xlane.xlu0 %1729
          %1731 = vadd.xlane.f32.xlu0 %v1697
          %v1732 = vpop.xlane.xlu0 %1731
          %1733 = vadd.xlane.f32.xlu0 %v1698
          %v1734 = vpop.xlane.xlu0 %1733
          %1735 = vadd.xlane.f32.xlu0 %v1699
          %v1736 = vpop.xlane.xlu0 %1735
          %1737 = vadd.xlane.f32.xlu0 %v1700
          %v1738 = vpop.xlane.xlu0 %1737
          %1739 = vadd.xlane.f32.xlu0 %v1701
          %v1740 = vpop.xlane.xlu0 %1739
          %1741 = vadd.xlane.f32.xlu0 %v1702
          %v1742 = vpop.xlane.xlu0 %1741
          %1743 = vadd.xlane.f32.xlu0 %v1703
          %v1744 = vpop.xlane.xlu0 %1743
          %1745 = vadd.xlane.f32.xlu0 %v1704
          %v1746 = vpop.xlane.xlu0 %1745
          %1747 = vadd.xlane.f32.xlu0 %v1705
          %v1748 = vpop.xlane.xlu0 %1747
          %1749 = vadd.xlane.f32.xlu0 %v1706
          %v1750 = vpop.xlane.xlu0 %1749
          %1751 = vadd.xlane.f32.xlu0 %v1707
          %v1752 = vpop.xlane.xlu0 %1751
          %1753 = vadd.xlane.f32.xlu0 %v1708
          %v1754 = vpop.xlane.xlu0 %1753
          %1755 = vadd.xlane.f32.xlu0 %v1709
          %v1756 = vpop.xlane.xlu0 %1755
          %1757 = vadd.xlane.f32.xlu0 %v1710
          %v1758 = vpop.xlane.xlu0 %1757
          %1759 = vadd.xlane.f32.xlu0 %v1711
          %v1760 = vpop.xlane.xlu0 %1759
          %1761 = vadd.xlane.f32.xlu0 %v1712
          %v1762 = vpop.xlane.xlu0 %1761
          %1763 = vadd.xlane.f32.xlu0 %v1713
          %v1764 = vpop.xlane.xlu0 %1763
          %1765 = vadd.xlane.f32.xlu0 %v1714
          %v1766 = vpop.xlane.xlu0 %1765
          %1767 = vadd.xlane.f32.xlu0 %v1715
          %v1768 = vpop.xlane.xlu0 %1767
          %1769 = vadd.xlane.f32.xlu0 %v1716
          %v1770 = vpop.xlane.xlu0 %1769
          %1771 = vadd.xlane.f32.xlu0 %v1717
          %v1772 = vpop.xlane.xlu0 %1771
          %1773 = vadd.xlane.f32.xlu0 %v1718
          %v1774 = vpop.xlane.xlu0 %1773
          %1775 = vadd.xlane.f32.xlu0 %v1719
          %v1776 = vpop.xlane.xlu0 %1775
          %1777 = vadd.xlane.f32.xlu0 %v1720
          %v1778 = vpop.xlane.xlu0 %1777
          %1779 = vadd.xlane.f32.xlu0 %v1721
          %v1780 = vpop.xlane.xlu0 %1779
          %1781 = vadd.xlane.f32.xlu0 %v1722
          %v1782 = vpop.xlane.xlu0 %1781
          %1783 = vadd.xlane.f32.xlu0 %v1723
          %v1784 = vpop.xlane.xlu0 %1783
          %1785 = vadd.xlane.f32.xlu0 %v1724
          %v1786 = vpop.xlane.xlu0 %1785
          %1787 = vadd.xlane.f32.xlu0 %v1725
          %v1788 = vpop.xlane.xlu0 %1787
          %1789 = vadd.xlane.f32.xlu0 %v1726
          %v1790 = vpop.xlane.xlu0 %1789
          %v1791 = vmax.f32 %v1728, 1e-24
          %v1792 = vmax.f32 %v1730, 1e-24
          %v1793 = vmax.f32 %v1732, 1e-24
          %v1794 = vmax.f32 %v1734, 1e-24
          %v1795 = vmax.f32 %v1736, 1e-24
          %v1796 = vmax.f32 %v1738, 1e-24
          %v1797 = vmax.f32 %v1740, 1e-24
          %v1798 = vmax.f32 %v1742, 1e-24
          %v1799 = vmax.f32 %v1744, 1e-24
          %v1800 = vmax.f32 %v1746, 1e-24
          %v1801 = vmax.f32 %v1748, 1e-24
          %v1802 = vmax.f32 %v1750, 1e-24
          %v1803 = vmax.f32 %v1752, 1e-24
          %v1804 = vmax.f32 %v1754, 1e-24
          %v1805 = vmax.f32 %v1756, 1e-24
          %v1806 = vmax.f32 %v1758, 1e-24
          %v1807 = vmax.f32 %v1760, 1e-24
          %v1808 = vmax.f32 %v1762, 1e-24
          %v1809 = vmax.f32 %v1764, 1e-24
          %v1810 = vmax.f32 %v1766, 1e-24
          %v1811 = vmax.f32 %v1768, 1e-24
          %v1812 = vmax.f32 %v1770, 1e-24
          %v1813 = vmax.f32 %v1772, 1e-24
          %v1814 = vmax.f32 %v1774, 1e-24
          %v1815 = vmax.f32 %v1776, 1e-24
          %v1816 = vmax.f32 %v1778, 1e-24
          %v1817 = vmax.f32 %v1780, 1e-24
          %v1818 = vmax.f32 %v1782, 1e-24
          %v1819 = vmax.f32 %v1784, 1e-24
          %v1820 = vmax.f32 %v1786, 1e-24
          %v1821 = vmax.f32 %v1788, 1e-24
          %v1822 = vmax.f32 %v1790, 1e-24
          %v1823 = vrsqrt.pop %v1791
          %v1824 = vrsqrt.pop %v1792
          %v1825 = vrsqrt.pop %v1793
          %v1826 = vrsqrt.pop %v1794
          %v1827 = vrsqrt.pop %v1795
          %v1828 = vrsqrt.pop %v1796
          %v1829 = vrsqrt.pop %v1797
          %v1830 = vrsqrt.pop %v1798
          %v1831 = vrsqrt.pop %v1799
          %v1832 = vrsqrt.pop %v1800
          %v1833 = vrsqrt.pop %v1801
          %v1834 = vrsqrt.pop %v1802
          %v1835 = vrsqrt.pop %v1803
          %v1836 = vrsqrt.pop %v1804
          %v1837 = vrsqrt.pop %v1805
          %v1838 = vrsqrt.pop %v1806
          %v1839 = vrsqrt.pop %v1807
          %v1840 = vrsqrt.pop %v1808
          %v1841 = vrsqrt.pop %v1809
          %v1842 = vrsqrt.pop %v1810
          %v1843 = vrsqrt.pop %v1811
          %v1844 = vrsqrt.pop %v1812
          %v1845 = vrsqrt.pop %v1813
          %v1846 = vrsqrt.pop %v1814
          %v1847 = vrsqrt.pop %v1815
          %v1848 = vrsqrt.pop %v1816
          %v1849 = vrsqrt.pop %v1817
          %v1850 = vrsqrt.pop %v1818
          %v1851 = vrsqrt.pop %v1819
          %v1852 = vrsqrt.pop %v1820
          %v1853 = vrsqrt.pop %v1821
          %v1854 = vrsqrt.pop %v1822
          %v1855 = vmul.f32 %v1537, %v1823
          %v1856 = vmul.f32 %v1542, %v1824
          %v1857 = vmul.f32 %v1547, %v1825
          %v1858 = vmul.f32 %v1552, %v1826
          %v1859 = vmul.f32 %v1557, %v1827
          %v1860 = vmul.f32 %v1562, %v1828
          %v1861 = vmul.f32 %v1567, %v1829
          %v1862 = vmul.f32 %v1572, %v1830
          %v1863 = vmul.f32 %v1577, %v1831
          %v1864 = vmul.f32 %v1582, %v1832
          %v1865 = vmul.f32 %v1587, %v1833
          %v1866 = vmul.f32 %v1592, %v1834
          %v1867 = vmul.f32 %v1597, %v1835
          %v1868 = vmul.f32 %v1602, %v1836
          %v1869 = vmul.f32 %v1607, %v1837
          %v1870 = vmul.f32 %v1612, %v1838
          %v1871 = vmul.f32 %v1617, %v1839
          %v1872 = vmul.f32 %v1622, %v1840
          %v1873 = vmul.f32 %v1627, %v1841
          %v1874 = vmul.f32 %v1632, %v1842
          %v1875 = vmul.f32 %v1637, %v1843
          %v1876 = vmul.f32 %v1642, %v1844
          %v1877 = vmul.f32 %v1647, %v1845
          %v1878 = vmul.f32 %v1652, %v1846
          %v1879 = vmul.f32 %v1657, %v1847
          %v1880 = vmul.f32 %v1662, %v1848
          %v1881 = vmul.f32 %v1667, %v1849
          %v1882 = vmul.f32 %v1672, %v1850
          %v1883 = vmul.f32 %v1677, %v1851
          %v1884 = vmul.f32 %v1682, %v1852
          %v1885 = vmul.f32 %v1687, %v1853
          %v1886 = vmul.f32 %v1692, %v1854
          %v1887 = vtanh.pop %v1855
          %v1888 = vtanh.pop %v1856
          %v1889 = vtanh.pop %v1857
          %v1890 = vtanh.pop %v1858
          %v1891 = vtanh.pop %v1859
          %v1892 = vtanh.pop %v1860
          %v1893 = vtanh.pop %v1861
          %v1894 = vtanh.pop %v1862
          %v1895 = vtanh.pop %v1863
          %v1896 = vtanh.pop %v1864
          %v1897 = vtanh.pop %v1865
          %v1898 = vtanh.pop %v1866
          %v1899 = vtanh.pop %v1867
          %v1900 = vtanh.pop %v1868
          %v1901 = vtanh.pop %v1869
          %v1902 = vtanh.pop %v1870
          %v1903 = vtanh.pop %v1871
          %v1904 = vtanh.pop %v1872
          %v1905 = vtanh.pop %v1873
          %v1906 = vtanh.pop %v1874
          %v1907 = vtanh.pop %v1875
          %v1908 = vtanh.pop %v1876
          %v1909 = vtanh.pop %v1877
          %v1910 = vtanh.pop %v1878
          %v1911 = vtanh.pop %v1879
          %v1912 = vtanh.pop %v1880
          %v1913 = vtanh.pop %v1881
          %v1914 = vtanh.pop %v1882
          %v1915 = vtanh.pop %v1883
          %v1916 = vtanh.pop %v1884
          %v1917 = vtanh.pop %v1885
          %v1918 = vtanh.pop %v1886
          %1919 = vst [vmem:[%s248] sm:$0xff] %v1887
          %1920 = vst [vmem:[%s248 + $0x8] sm:$0xff] %v1888
          %1921 = vst [vmem:[%s248 + $0x10] sm:$0xff] %v1889
          %1922 = vst [vmem:[%s248 + $0x18] sm:$0xff] %v1890
          %1923 = vst [vmem:[%s248 + $0x20] sm:$0xff] %v1891
          %1924 = vst [vmem:[%s248 + $0x28] sm:$0xff] %v1892
          %1925 = vst [vmem:[%s248 + $0x30] sm:$0xff] %v1893
          %1926 = vst [vmem:[%s248 + $0x38] sm:$0xff] %v1894
          %1927 = vst [vmem:[%s248 + $0x40] sm:$0xff] %v1895
          %1928 = vst [vmem:[%s248 + $0x48] sm:$0xff] %v1896
          %1929 = vst [vmem:[%s248 + $0x50] sm:$0xff] %v1897
          %1930 = vst [vmem:[%s248 + $0x58] sm:$0xff] %v1898
          %1931 = vst [vmem:[%s248 + $0x60] sm:$0xff] %v1899
          %1932 = vst [vmem:[%s248 + $0x68] sm:$0xff] %v1900
          %1933 = vst [vmem:[%s248 + $0x70] sm:$0xff] %v1901
          %1934 = vst [vmem:[%s248 + $0x78] sm:$0xff] %v1902
          %1935 = vst [vmem:[%s248 + $0x80] sm:$0xff] %v1903
          %1936 = vst [vmem:[%s248 + $0x88] sm:$0xff] %v1904
          %1937 = vst [vmem:[%s248 + $0x90] sm:$0xff] %v1905
          %1938 = vst [vmem:[%s248 + $0x98] sm:$0xff] %v1906
          %1939 = vst [vmem:[%s248 + $0xa0] sm:$0xff] %v1907
          %1940 = vst [vmem:[%s248 + $0xa8] sm:$0xff] %v1908
          %1941 = vst [vmem:[%s248 + $0xb0] sm:$0xff] %v1909
          %1942 = vst [vmem:[%s248 + $0xb8] sm:$0xff] %v1910
          %1943 = vst [vmem:[%s248 + $0xc0] sm:$0xff] %v1911
          %1944 = vst [vmem:[%s248 + $0xc8] sm:$0xff] %v1912
          %1945 = vst [vmem:[%s248 + $0xd0] sm:$0xff] %v1913
          %1946 = vst [vmem:[%s248 + $0xd8] sm:$0xff] %v1914
          %1947 = vst [vmem:[%s248 + $0xe0] sm:$0xff] %v1915
          %1948 = vst [vmem:[%s248 + $0xe8] sm:$0xff] %v1916
          %1949 = vst [vmem:[%s248 + $0xf0] sm:$0xff] %v1917
          %1950 = vst [vmem:[%s248 + $0xf8] sm:$0xff] %v1918
        $region44: #{tpu_custom_call.1} parent=35 // pred_fallthru
          _
        %s1951 = sand.u32 %s139, 1
        %s1952 = scalar_lea.sflag [#allocation4], %s1951
        %s1953 = sand.u32 %s139, 1
        %s1954 = smul.addr %s1953, 256
        %s1955 = scalar_lea.vmem [#allocation3], %s1954
        // Predicated region
        $region45: #{tpu_custom_call.1} parent=35 // pred_check
          %p1956 = pneg %p149
        $region46: #{tpu_custom_call.1} parent=35 // pred_check_branch
          %1958 = sbr.rel (%p1956) target = $region48
        $region47: #{tpu_custom_call.1} parent=35 // pred_region
          %s1959 = smul.u32 32, %s22
          %s1961 = ssub.s32 4096, 4096
          %1962 = vsyncadd %s1952, %s1961
          %s1963 = smul.addr %s1959, 128
          %s1964 = scalar_lea.hbm %s4, %s1963
          %s1965 = sshll.u32 %s1955, 4
          %s1966 = int_to_ptr.vmem [resolvable:$true] %s1965
          %1971 = dma.vmem_to_hbm [thread:$0]  %s1966, 4096, %s1964, %s1952, 128, 128, 8
        $region48: #{tpu_custom_call.1} parent=35 // pred_fallthru
          _
      $region36: #{tpu_custom_call.1} parent=5 // pred_fallthru
        _
      %p1972 = scmp.le.s32.totalorder 2, %s13
      // Predicated region
      $region49: #{tpu_custom_call.1} parent=5 // pred_check
        %p1973 = pneg %p1972
      $region50: #{tpu_custom_call.1} parent=5 // pred_check_branch
        %1975 = sbr.rel (%p1973) target = $region52
      $region51: #{tpu_custom_call.1} parent=5 // pred_region
        %s1976 = ssub.s32 %s13, 2
        // Predicated region
        $region53: #{tpu_custom_call.1} parent=51 // pred_check
          %p1977 = pneg %p155
        $region54: #{tpu_custom_call.1} parent=51 // pred_check_branch
          %1979 = sbr.rel (%p1977) target = $region56
        $region55: #{tpu_custom_call.1} parent=51 // pred_region
          %s1980 = sand.u32 %s140, 1
          %s1981 = scalar_lea.sflag [#allocation4], %s1980
          %s1982 = sand.u32 %s140, 1
          %s1983 = smul.addr %s1982, 256
          %s1984 = scalar_lea.vmem [#allocation3], %s1983
          %1985 = dma.done %s1981, 4096
        $region56: #{tpu_custom_call.1} parent=51 // pred_fallthru
          _
      $region52: #{tpu_custom_call.1} parent=5 // pred_fallthru
        _
    $region6: #{tpu_custom_call.1} parent=1 // loop_footer
      %s17 = sadd.s32 1, %s13
    $region7: #{tpu_custom_call.1} parent=1 // loop_footer_branch
      %12 = sbr.rel target = $region3
    $region8: #{tpu_custom_call.1} parent=1 // loop_exit
      _
    %1986 = vsyncpa [#allocation4], 1
    %s1987 = scalar_lea.sflag [#allocation4], 1
    %1988 = vsyncpa %s1987, 1

</llo_original>
